<compile_context>
chip_gen: v6e
topology: v6e:2x2x1
jax: 0.10.0
libtpu: 0.0.40
codegen_flags: <defaults>
</compile_context>

<pallas_src>
import functools

import jax
import jax.numpy as jnp
import numpy as np
from jax.experimental import pallas as pl
from jax.experimental.pallas import tpu as pltpu


# --------------------------------------------------------------------------
# Kernels
# --------------------------------------------------------------------------
def _conv_core(y, wcomb_ref, bcomb_ref, out_ref, sum_ref, sumsq_ref, lhs_ref,
               matmul_dtype):
    """Fused (depthwise-3x3 ∘ pointwise-1x1) transposed conv + BN statistics.

    y         : (H, W, Cin) f32 tile (previous-stage BN+ReLU already applied
                when fused).
    wcomb_ref : (9*Cin, Cout) combined weight (dw taps folded into pw matmul).
    bcomb_ref : (1, Cout)     combined bias.
    out_ref   : (1, H, W, Cout) conv output tile.
    sum_ref, sumsq_ref : (1, Cout) f32 BN batch statistics, accumulated across
                the grid (constant output block index, grid axis "arbitrary").
    lhs_ref   : (H, W, 9*Cin) f32 VMEM scratch holding the im2col matrix.
    """
    _, H, W, Cout = out_ref.shape
    Cin = y.shape[-1]

    # Init the stat accumulators once, at the first grid step.
    @pl.when(pl.program_id(0) == 0)
    def _():
        sum_ref[...] = jnp.zeros((1, Cout), jnp.float32)
        sumsq_ref[...] = jnp.zeros((1, Cout), jnp.float32)

    # im2col with implicit zero padding: the zeroed scratch border plays the
    # role of the 1-pixel halo (never materialized in HBM).
    lhs_ref[...] = jnp.zeros(lhs_ref.shape, lhs_ref.dtype)
    for u in range(3):
        du = u - 1
        r0, r1 = max(0, -du), H - max(0, du)          # valid destination rows
        for v in range(3):
            dv = v - 1
            c0, c1 = max(0, -dv), W - max(0, dv)      # valid destination cols
            tap = u * 3 + v
            lhs_ref[r0:r1, c0:c1, tap * Cin:(tap + 1) * Cin] = \
                y[r0 + du:r1 + du, c0 + dv:c1 + dv, :]

    # Single MXU matmul: (H*W, 9*Cin) @ (9*Cin, Cout), f32 accumulation.
    lhs = lhs_ref[...].reshape(H * W, 9 * Cin).astype(matmul_dtype)
    out = jnp.dot(lhs, wcomb_ref[...],
                  preferred_element_type=jnp.float32) + bcomb_ref[0]

    out_ref[0] = out.reshape(H, W, Cout).astype(out_ref.dtype)

    # Fused BatchNorm batch statistics (always f32, from the pre-cast result).
    sum_ref[...] += jnp.sum(out, axis=0, keepdims=True)
    sumsq_ref[...] += jnp.sum(out * out, axis=0, keepdims=True)


def _conv_kernel(x_ref, wcomb_ref, bcomb_ref, out_ref, sum_ref, sumsq_ref,
                 lhs_ref, *, matmul_dtype):
    """Stage-1 variant: raw input, no fused BN/ReLU on the load path."""
    _conv_core(x_ref[0].astype(jnp.float32), wcomb_ref, bcomb_ref,
               out_ref, sum_ref, sumsq_ref, lhs_ref, matmul_dtype)


def _bnrelu_conv_kernel(x_ref, scale_ref, shift_ref, wcomb_ref, bcomb_ref,
                        out_ref, sum_ref, sumsq_ref, lhs_ref, *, matmul_dtype):
    """Stage-2 variant: previous stage's BN (scale/shift form) + ReLU fused
    into the load path; elementwise math kept in f32 (v5e-safe)."""
    y = jnp.maximum(
        x_ref[0].astype(jnp.float32) * scale_ref[0] + shift_ref[0], 0.0)
    _conv_core(y, wcomb_ref, bcomb_ref, out_ref, sum_ref, sumsq_ref, lhs_ref,
               matmul_dtype)


def _bn_relu_kernel(x_ref, scale_ref, shift_ref, out_ref):
    """Final BN+ReLU on a lane-dense (H, W*C) view; scale/shift pre-tiled."""
    out_ref[0] = jnp.maximum(
        x_ref[0].astype(jnp.float32) * scale_ref[0] + shift_ref[0], 0.0
    ).astype(out_ref.dtype)


# --------------------------------------------------------------------------
# Wrappers
# --------------------------------------------------------------------------
def _combine_weights(w_dw, b_dw, w_pw, b_pw, matmul_dtype):
    """Fold depthwise 3x3 (transposed) + pointwise 1x1 (transposed) into one
    (9*Cin, Cout) matmul weight and a single bias vector."""
    cin = w_dw.shape[0]
    cout = w_pw.shape[1]
    # transposed conv (stride 1, pad 1) == correlation with the flipped kernel
    wdw_f = jnp.transpose(w_dw[:, 0, ::-1, ::-1], (1, 2, 0)).reshape(9, cin)
    wpw = w_pw[:, :, 0, 0]                                       # (Cin, Cout)
    wcomb = (wdw_f[:, :, None] * wpw[None, :, :]).reshape(9 * cin, cout)
    bcomb = b_dw @ wpw + b_pw                                    # (Cout,)
    return wcomb.astype(matmul_dtype), bcomb.reshape(1, cout).astype(jnp.float32)


def conv_stage(x_nhwc, w_dw, b_dw, w_pw, b_pw, scale=None, shift=None,
               *, matmul_dtype=jnp.float32, act_dtype=jnp.float32):
    """One fused stage in a single pallas_call:
       [optional BN+ReLU of the previous stage] -> dw3x3 + pw1x1 transposed
       conv (one MXU matmul) -> (output tile, BN sum, BN sum-of-squares)."""
    N, H, W, Cin = x_nhwc.shape
    Cout = w_pw.shape[1]
    wcomb, bcomb = _combine_weights(w_dw, b_dw, w_pw, b_pw, matmul_dtype)

    const = lambda n: (0, 0)
    x_spec = pl.BlockSpec((1, H, W, Cin), lambda n: (n, 0, 0, 0))
    w_specs = [pl.BlockSpec((9 * Cin, Cout), const),
               pl.BlockSpec((1, Cout), const)]

    if scale is None:
        kernel = functools.partial(_conv_kernel, matmul_dtype=matmul_dtype)
        in_specs = [x_spec] + w_specs
        args = (x_nhwc, wcomb, bcomb)
    else:
        kernel = functools.partial(_bnrelu_conv_kernel, matmul_dtype=matmul_dtype)
        in_specs = [x_spec,
                    pl.BlockSpec((1, Cin), const),
                    pl.BlockSpec((1, Cin), const)] + w_specs
        args = (x_nhwc,
                scale.reshape(1, Cin).astype(jnp.float32),
                shift.reshape(1, Cin).astype(jnp.float32),
                wcomb, bcomb)

    out, s, ssq = pl.pallas_call(
        kernel,
        out_shape=(jax.ShapeDtypeStruct((N, H, W, Cout), act_dtype),
                   jax.ShapeDtypeStruct((1, Cout), jnp.float32),
                   jax.ShapeDtypeStruct((1, Cout), jnp.float32)),
        grid=(N,),
        in_specs=in_specs,
        out_specs=(pl.BlockSpec((1, H, W, Cout), lambda n: (n, 0, 0, 0)),
                   pl.BlockSpec((1, Cout), const),
                   pl.BlockSpec((1, Cout), const)),
        scratch_shapes=[pltpu.VMEM((H, W, 9 * Cin), jnp.float32)],
        # Batch axis MUST be "arbitrary": the stats outputs have a constant
        # index_map and accumulate across it ("parallel" would race).
        compiler_params=pltpu.CompilerParams(
            dimension_semantics=("arbitrary",)),
    )(*args)

    count = float(N * H * W)
    mean = s[0] / count
    var = jnp.maximum(ssq[0] / count - mean * mean, 0.0)   # clamp: no negative var
    return out, mean, var


def _bn_scale_shift(mean, var, gamma, beta, eps):
    scale = gamma / jnp.sqrt(var + eps)
    shift = beta - mean * scale
    return scale, shift


def bn_relu_final(x_nhwc, scale, shift):
    """Final BN+ReLU, lane-dense: operates on an (N, H, W*C) view (W*C = 128
    for the shapes here) so loads/stores are full-lane."""
    N, H, W, C = x_nhwc.shape
    x_flat = x_nhwc.reshape(N, H, W * C)                    # free (metadata) in XLA
    scale_t = jnp.tile(scale, W).reshape(1, W * C).astype(jnp.float32)
    shift_t = jnp.tile(shift, W).reshape(1, W * C).astype(jnp.float32)
    const = lambda n: (0, 0)
    y = pl.pallas_call(
        _bn_relu_kernel,
        out_shape=jax.ShapeDtypeStruct((N, H, W * C), jnp.float32),
        grid=(N,),
        in_specs=[pl.BlockSpec((1, H, W * C), lambda n: (n, 0, 0)),
                  pl.BlockSpec((1, W * C), const),
                  pl.BlockSpec((1, W * C), const)],
        out_specs=pl.BlockSpec((1, H, W * C), lambda n: (n, 0, 0)),
        compiler_params=pltpu.CompilerParams(
            dimension_semantics=("parallel",)),
    )(x_flat, scale_t, shift_t)
    return y.reshape(N, H, W, C)


def udepthwise_forward(x_nchw, p, *, eps=1e-5,
                       act_dtype=jnp.float32, matmul_dtype=jnp.float32):
    """Forward pass of UDepthwise (training-mode BatchNorm batch statistics).
    Input/output: NCHW float32 (PyTorch layout).
    act_dtype / matmul_dtype = bf16 is the v6e/v7x configuration; f32 is exact
    and the v5e-safe default."""
    x = jnp.transpose(x_nchw, (0, 2, 3, 1)).astype(act_dtype)        # -> NHWC

    # Stage 1: conv (dw3x3 + pw1x1) + fused BN statistics.
    h1, m1, v1 = conv_stage(x, p["w_dw1"], p["b_dw1"], p["w_pw1"], p["b_pw1"],
                            matmul_dtype=matmul_dtype, act_dtype=act_dtype)
    s1, b1 = _bn_scale_shift(m1, v1, p["gamma1"], p["beta1"], eps)

    # Stage 2: BN1+ReLU fused into the conv kernel's input path.
    h2, m2, v2 = conv_stage(h1, p["w_dw2"], p["b_dw2"], p["w_pw2"], p["b_pw2"],
                            scale=s1, shift=b1,
                            matmul_dtype=matmul_dtype, act_dtype=act_dtype)
    s2, b2 = _bn_scale_shift(m2, v2, p["gamma2"], p["beta2"], eps)

    y = bn_relu_final(h2, s2, b2)
    return jnp.transpose(y, (0, 3, 1, 2))                            # -> NCHW


# --------------------------------------------------------------------------
# Deterministic parameter init (shapes follow the PyTorch module __init__)
# --------------------------------------------------------------------------
def init_params(key, cin, cout):
    ks = jax.random.split(key, 8)

    def u(k, shape, fan):
        b = 1.0 / jnp.sqrt(jnp.float32(fan))
        return jax.random.uniform(k, shape, jnp.float32, -b, b)

    return dict(
        # ConvTranspose2d(cin, cin, 3, groups=cin): weight (cin, 1, 3, 3)
        w_dw1=u(ks[0], (cin, 1, 3, 3), 9),
        b_dw1=u(ks[1], (cin,), 9),
        # ConvTranspose2d(cin, cout, 1): weight (cin, cout, 1, 1)
        w_pw1=u(ks[2], (cin, cout, 1, 1), cin),
        b_pw1=u(ks[3], (cout,), cin),
        gamma1=jnp.ones((cout,), jnp.float32),
        beta1=jnp.zeros((cout,), jnp.float32),
        w_dw2=u(ks[4], (cout, 1, 3, 3), 9),
        b_dw2=u(ks[5], (cout,), 9),
        w_pw2=u(ks[6], (cout, cout, 1, 1), cout),
        b_pw2=u(ks[7], (cout,), cout),
        gamma2=jnp.ones((cout,), jnp.float32),
        beta2=jnp.zeros((cout,), jnp.float32),
    )


# --------------------------------------------------------------------------
# Pure-jnp reference (same math, no Pallas) for the sanity check
# --------------------------------------------------------------------------
def _ref_conv_block(x, w_dw, b_dw, w_pw, b_pw):
    N, H, W, Cin = x.shape
    xp = jnp.pad(x, ((0, 0), (1, 1), (1, 1), (0, 0)))
    wf = jnp.transpose(w_dw[:, 0, ::-1, ::-1], (1, 2, 0))
    acc = jnp.zeros_like(x)
    for u in range(3):
        for v in range(3):
            acc = acc + xp[:, u:u + H, v:v + W, :] * wf[u, v, :]
    acc = acc + b_dw
    return jnp.einsum("nhwc,cd->nhwd", acc, w_pw[:, :, 0, 0]) + b_pw


def _ref_forward(x_nchw, p, eps=1e-5):
    x = jnp.transpose(x_nchw, (0, 2, 3, 1))

    def bn_relu_ref(h, g, b):
        m = jnp.mean(h, axis=(0, 1, 2))
        v = jnp.mean(h * h, axis=(0, 1, 2)) - m * m
        return jnp.maximum((h - m) / jnp.sqrt(v + eps) * g + b, 0.0)

    h = _ref_conv_block(x, p["w_dw1"], p["b_dw1"], p["w_pw1"], p["b_pw1"])
    h = bn_relu_ref(h, p["gamma1"], p["beta1"])
    h = _ref_conv_block(h, p["w_dw2"], p["b_dw2"], p["w_pw2"], p["b_pw2"])
    h = bn_relu_ref(h, p["gamma2"], p["beta2"])
    return jnp.transpose(h, (0, 3, 1, 2))


# --------------------------------------------------------------------------
if __name__ == "__main__":
    key = jax.random.PRNGKey(0)
    kx, kp = jax.random.split(key)

    N, Cin, H, W = 2, 4, 16, 16
    Cout = 8

    x = jax.random.normal(kx, (N, Cin, H, W), jnp.float32)   # NCHW, like PyTorch
    params = init_params(kp, Cin, Cout)

    y_ref = jax.block_until_ready(_ref_forward(x, params))

    # f32 path: exact module semantics (also the v5e-safe configuration).
    y = jax.block_until_ready(udepthwise_forward(x, params))
    assert y.shape == (N, Cout, H, W)
    np.testing.assert_allclose(np.asarray(y), np.asarray(y_ref),
                               atol=1e-3, rtol=1e-3)

    # bf16 activations + bf16 MXU operands, f32 accumulation & f32 BN math
    # (the v6e / v7x configuration from the performance review).
    y_bf16 = jax.block_until_ready(
        udepthwise_forward(x, params,
                           act_dtype=jnp.bfloat16, matmul_dtype=jnp.bfloat16))
    np.testing.assert_allclose(np.asarray(y_bf16), np.asarray(y_ref),
                               atol=5e-2, rtol=5e-2)

    print("KERNEL_OK")
</pallas_src>

<mosaic_0001>
module attributes {stable_mosaic.version = 11 : i64} {
  func.func @_conv_kernel(%arg0: i32, %arg1: memref<1x16x16x4xf32, #tpu.memory_space<vmem>>, %arg2: memref<36x8xf32, #tpu.memory_space<vmem>>, %arg3: memref<1x8xf32, #tpu.memory_space<vmem>>, %arg4: memref<1x16x16x8xf32, #tpu.memory_space<vmem>>, %arg5: memref<1x8xf32, #tpu.memory_space<vmem>>, %arg6: memref<1x8xf32, #tpu.memory_space<vmem>>, %arg7: memref<16x16x36xf32, #tpu.memory_space<vmem>>) attributes {dimension_semantics = [#tpu.dimension_semantics<arbitrary>], iteration_bounds = array<i64: 2>, scalar_prefetch = 0 : i64, scratch_operands = 1 : i64, tpu.core_type = #tpu.core_type<tc>, window_params = [{transform_indices = @transform_0, window_bounds = array<i64: 1, 16, 16, 4>}, {pipeline_mode = #tpu.pipeline_mode<synchronous>, transform_indices = @transform_1, window_bounds = array<i64: 36, 8>}, {pipeline_mode = #tpu.pipeline_mode<synchronous>, transform_indices = @transform_2, window_bounds = array<i64: 1, 8>}, {transform_indices = @transform_3, window_bounds = array<i64: 1, 16, 16, 8>}, {pipeline_mode = #tpu.pipeline_mode<synchronous>, transform_indices = @transform_4, window_bounds = array<i64: 1, 8>}, {pipeline_mode = #tpu.pipeline_mode<synchronous>, transform_indices = @transform_5, window_bounds = array<i64: 1, 8>}]} {
    %c0 = arith.constant 0 : index
    %c0_0 = arith.constant 0 : index
    %c0_1 = arith.constant 0 : index
    %c0_2 = arith.constant 0 : index
    %0 = vector.load %arg1[%c0, %c0_0, %c0_1, %c0_2] : memref<1x16x16x4xf32, #tpu.memory_space<vmem>>, vector<1x16x16x4xf32>
    %1 = vector.shape_cast %0 : vector<1x16x16x4xf32> to vector<16x16x4xf32>
    %c0_i32 = arith.constant 0 : i32
    %2 = arith.cmpi eq, %arg0, %c0_i32 : i32
    %3 = arith.extui %2 : i1 to i32
    %c0_i32_3 = arith.constant 0 : i32
    %4 = arith.cmpi ne, %3, %c0_i32_3 : i32
    scf.if %4 {
      %cst_47 = arith.constant 0.000000e+00 : f32
      %48 = vector.broadcast %cst_47 : f32 to vector<1x8xf32>
      %c0_48 = arith.constant 0 : index
      %c0_49 = arith.constant 0 : index
      %49 = vector.load %arg5[%c0_48, %c0_49] : memref<1x8xf32, #tpu.memory_space<vmem>>, vector<1x8xf32>
      tpu.vector_store %arg5[%c0_48, %c0_49], %48 {strides = array<i32>} : memref<1x8xf32, #tpu.memory_space<vmem>>, vector<1x8xf32>,
      %cst_50 = arith.constant 0.000000e+00 : f32
      %50 = vector.broadcast %cst_50 : f32 to vector<1x8xf32>
      %c0_51 = arith.constant 0 : index
      %c0_52 = arith.constant 0 : index
      %51 = vector.load %arg6[%c0_51, %c0_52] : memref<1x8xf32, #tpu.memory_space<vmem>>, vector<1x8xf32>
      tpu.vector_store %arg6[%c0_51, %c0_52], %50 {strides = array<i32>} : memref<1x8xf32, #tpu.memory_space<vmem>>, vector<1x8xf32>,
    } else {
    }
    %cst = arith.constant 0.000000e+00 : f32
    %5 = vector.broadcast %cst : f32 to vector<16x16x36xf32>
    %c0_4 = arith.constant 0 : index
    %c0_5 = arith.constant 0 : index
    %c0_6 = arith.constant 0 : index
    %6 = vector.load %arg7[%c0_4, %c0_5, %c0_6] : memref<16x16x36xf32, #tpu.memory_space<vmem>>, vector<16x16x36xf32>
    tpu.vector_store %arg7[%c0_4, %c0_5, %c0_6], %5 {strides = array<i32>} : memref<16x16x36xf32, #tpu.memory_space<vmem>>, vector<16x16x36xf32>,
    %7 = vector.extract_strided_slice %1 {offsets = [0, 0, 0], sizes = [15, 15, 4], strides = [1, 1, 1]} : vector<16x16x4xf32> to vector<15x15x4xf32>
    %c1 = arith.constant 1 : index
    %c1_7 = arith.constant 1 : index
    %c0_8 = arith.constant 0 : index
    %8 = vector.load %arg7[%c1, %c1_7, %c0_8] : memref<16x16x36xf32, #tpu.memory_space<vmem>>, vector<15x15x4xf32>
    tpu.vector_store %arg7[%c1, %c1_7, %c0_8], %7 {strides = array<i32>} : memref<16x16x36xf32, #tpu.memory_space<vmem>>, vector<15x15x4xf32>,
    %9 = vector.extract_strided_slice %1 {offsets = [0, 0, 0], sizes = [15, 16, 4], strides = [1, 1, 1]} : vector<16x16x4xf32> to vector<15x16x4xf32>
    %c1_9 = arith.constant 1 : index
    %c0_10 = arith.constant 0 : index
    %c4 = arith.constant 4 : index
    %10 = vector.load %arg7[%c1_9, %c0_10, %c4] : memref<16x16x36xf32, #tpu.memory_space<vmem>>, vector<15x16x4xf32>
    tpu.vector_store %arg7[%c1_9, %c0_10, %c4], %9 {strides = array<i32>} : memref<16x16x36xf32, #tpu.memory_space<vmem>>, vector<15x16x4xf32>,
    %11 = vector.extract_strided_slice %1 {offsets = [0, 1, 0], sizes = [15, 15, 4], strides = [1, 1, 1]} : vector<16x16x4xf32> to vector<15x15x4xf32>
    %c1_11 = arith.constant 1 : index
    %c0_12 = arith.constant 0 : index
    %c8 = arith.constant 8 : index
    %12 = vector.load %arg7[%c1_11, %c0_12, %c8] : memref<16x16x36xf32, #tpu.memory_space<vmem>>, vector<15x15x4xf32>
    tpu.vector_store %arg7[%c1_11, %c0_12, %c8], %11 {strides = array<i32>} : memref<16x16x36xf32, #tpu.memory_space<vmem>>, vector<15x15x4xf32>,
    %13 = vector.extract_strided_slice %1 {offsets = [0, 0, 0], sizes = [16, 15, 4], strides = [1, 1, 1]} : vector<16x16x4xf32> to vector<16x15x4xf32>
    %c0_13 = arith.constant 0 : index
    %c1_14 = arith.constant 1 : index
    %c12 = arith.constant 12 : index
    %14 = vector.load %arg7[%c0_13, %c1_14, %c12] : memref<16x16x36xf32, #tpu.memory_space<vmem>>, vector<16x15x4xf32>
    tpu.vector_store %arg7[%c0_13, %c1_14, %c12], %13 {strides = array<i32>} : memref<16x16x36xf32, #tpu.memory_space<vmem>>, vector<16x15x4xf32>,
    %c0_15 = arith.constant 0 : index
    %c0_16 = arith.constant 0 : index
    %c16 = arith.constant 16 : index
    %15 = vector.load %arg7[%c0_15, %c0_16, %c16] : memref<16x16x36xf32, #tpu.memory_space<vmem>>, vector<16x16x4xf32>
    tpu.vector_store %arg7[%c0_15, %c0_16, %c16], %1 {strides = array<i32>} : memref<16x16x36xf32, #tpu.memory_space<vmem>>, vector<16x16x4xf32>,
    %16 = vector.extract_strided_slice %1 {offsets = [0, 1, 0], sizes = [16, 15, 4], strides = [1, 1, 1]} : vector<16x16x4xf32> to vector<16x15x4xf32>
    %c0_17 = arith.constant 0 : index
    %c0_18 = arith.constant 0 : index
    %c20 = arith.constant 20 : index
    %17 = vector.load %arg7[%c0_17, %c0_18, %c20] : memref<16x16x36xf32, #tpu.memory_space<vmem>>, vector<16x15x4xf32>
    tpu.vector_store %arg7[%c0_17, %c0_18, %c20], %16 {strides = array<i32>} : memref<16x16x36xf32, #tpu.memory_space<vmem>>, vector<16x15x4xf32>,
    %18 = vector.extract_strided_slice %1 {offsets = [1, 0, 0], sizes = [15, 15, 4], strides = [1, 1, 1]} : vector<16x16x4xf32> to vector<15x15x4xf32>
    %c0_19 = arith.constant 0 : index
    %c1_20 = arith.constant 1 : index
    %c24 = arith.constant 24 : index
    %19 = vector.load %arg7[%c0_19, %c1_20, %c24] : memref<16x16x36xf32, #tpu.memory_space<vmem>>, vector<15x15x4xf32>
    tpu.vector_store %arg7[%c0_19, %c1_20, %c24], %18 {strides = array<i32>} : memref<16x16x36xf32, #tpu.memory_space<vmem>>, vector<15x15x4xf32>,
    %20 = vector.extract_strided_slice %1 {offsets = [1, 0, 0], sizes = [15, 16, 4], strides = [1, 1, 1]} : vector<16x16x4xf32> to vector<15x16x4xf32>
    %c0_21 = arith.constant 0 : index
    %c0_22 = arith.constant 0 : index
    %c28 = arith.constant 28 : index
    %21 = vector.load %arg7[%c0_21, %c0_22, %c28] : memref<16x16x36xf32, #tpu.memory_space<vmem>>, vector<15x16x4xf32>
    tpu.vector_store %arg7[%c0_21, %c0_22, %c28], %20 {strides = array<i32>} : memref<16x16x36xf32, #tpu.memory_space<vmem>>, vector<15x16x4xf32>,
    %22 = vector.extract_strided_slice %1 {offsets = [1, 1, 0], sizes = [15, 15, 4], strides = [1, 1, 1]} : vector<16x16x4xf32> to vector<15x15x4xf32>
    %c0_23 = arith.constant 0 : index
    %c0_24 = arith.constant 0 : index
    %c32 = arith.constant 32 : index
    %23 = vector.load %arg7[%c0_23, %c0_24, %c32] : memref<16x16x36xf32, #tpu.memory_space<vmem>>, vector<15x15x4xf32>
    tpu.vector_store %arg7[%c0_23, %c0_24, %c32], %22 {strides = array<i32>} : memref<16x16x36xf32, #tpu.memory_space<vmem>>, vector<15x15x4xf32>,
    %c0_25 = arith.constant 0 : index
    %c0_26 = arith.constant 0 : index
    %c0_27 = arith.constant 0 : index
    %24 = vector.load %arg7[%c0_25, %c0_26, %c0_27] : memref<16x16x36xf32, #tpu.memory_space<vmem>>, vector<16x16x36xf32>
    %25 = vector.shape_cast %24 : vector<16x16x36xf32> to vector<256x36xf32>
    %c0_28 = arith.constant 0 : index
    %c0_29 = arith.constant 0 : index
    %26 = vector.load %arg2[%c0_28, %c0_29] : memref<36x8xf32, #tpu.memory_space<vmem>>, vector<36x8xf32>
    %cst_30 = arith.constant dense<0.000000e+00> : vector<256x8xf32>
    %27 = tpu.matmul %25, %26, %cst_30 {dimension_numbers = #tpu.dot_dimension_numbers<[1], [0], [0], [1], [0, 0, 1, 1], [], []>} : vector<256x36xf32>, vector<36x8xf32>, vector<256x8xf32> -> vector<256x8xf32>
    %c0_31 = arith.constant 0 : index
    %c0_32 = arith.constant 0 : index
    %28 = vector.load %arg3[%c0_31, %c0_32] : memref<1x8xf32, #tpu.memory_space<vmem>>, vector<1x8xf32>
    %29 = vector.shape_cast %28 : vector<1x8xf32> to vector<8xf32>
    %30 = vector.shape_cast %29 : vector<8xf32> to vector<1x8xf32>
    %31 = vector.broadcast %30 : vector<1x8xf32> to vector<256x8xf32>
    %32 = arith.addf %27, %31 : vector<256x8xf32>
    %33 = vector.shape_cast %32 : vector<256x8xf32> to vector<16x16x8xf32>
    %c0_33 = arith.constant 0 : index
    %c0_34 = arith.constant 0 : index
    %c0_35 = arith.constant 0 : index
    %c0_36 = arith.constant 0 : index
    %34 = vector.load %arg4[%c0_33, %c0_34, %c0_35, %c0_36] : memref<1x16x16x8xf32, #tpu.memory_space<vmem>>, vector<1x16x16x8xf32>
    %35 = vector.shape_cast %34 : vector<1x16x16x8xf32> to vector<16x16x8xf32>
    %36 = vector.shape_cast %33 : vector<16x16x8xf32> to vector<1x16x16x8xf32>
    tpu.vector_store %arg4[%c0_33, %c0_34, %c0_35, %c0_36], %36 {strides = array<i32>} : memref<1x16x16x8xf32, #tpu.memory_space<vmem>>, vector<1x16x16x8xf32>,
    %c0_37 = arith.constant 0 : index
    %c0_38 = arith.constant 0 : index
    %37 = vector.load %arg5[%c0_37, %c0_38] : memref<1x8xf32, #tpu.memory_space<vmem>>, vector<1x8xf32>
    %cst_39 = arith.constant dense<0.000000e+00> : vector<8xf32>
    %38 = vector.multi_reduction <add>, %32, %cst_39 [0] : vector<256x8xf32> to vector<8xf32>
    %39 = vector.shape_cast %38 : vector<8xf32> to vector<1x8xf32>
    %40 = arith.addf %37, %39 : vector<1x8xf32>
    %c0_40 = arith.constant 0 : index
    %c0_41 = arith.constant 0 : index
    %41 = vector.load %arg5[%c0_40, %c0_41] : memref<1x8xf32, #tpu.memory_space<vmem>>, vector<1x8xf32>
    tpu.vector_store %arg5[%c0_40, %c0_41], %40 {strides = array<i32>} : memref<1x8xf32, #tpu.memory_space<vmem>>, vector<1x8xf32>,
    %c0_42 = arith.constant 0 : index
    %c0_43 = arith.constant 0 : index
    %42 = vector.load %arg6[%c0_42, %c0_43] : memref<1x8xf32, #tpu.memory_space<vmem>>, vector<1x8xf32>
    %43 = arith.mulf %32, %32 : vector<256x8xf32>
    %cst_44 = arith.constant dense<0.000000e+00> : vector<8xf32>
    %44 = vector.multi_reduction <add>, %43, %cst_44 [0] : vector<256x8xf32> to vector<8xf32>
    %45 = vector.shape_cast %44 : vector<8xf32> to vector<1x8xf32>
    %46 = arith.addf %42, %45 : vector<1x8xf32>
    %c0_45 = arith.constant 0 : index
    %c0_46 = arith.constant 0 : index
    %47 = vector.load %arg6[%c0_45, %c0_46] : memref<1x8xf32, #tpu.memory_space<vmem>>, vector<1x8xf32>
    tpu.vector_store %arg6[%c0_45, %c0_46], %46 {strides = array<i32>} : memref<1x8xf32, #tpu.memory_space<vmem>>, vector<1x8xf32>,
    return
  }
  func.func @transform_0(%arg0: i32) -> (i32, i32, i32, i32) {
    %c0_i32 = arith.constant 0 : i32
    %c0_i32_0 = arith.constant 0 : i32
    %c0_i32_1 = arith.constant 0 : i32
    %c0_i32_2 = arith.constant 0 : i32
    return %arg0, %c0_i32, %c0_i32_0, %c0_i32_1 : i32, i32, i32, i32
  }
  func.func @transform_1(%arg0: i32) -> (i32, i32) {
    %c0_i32 = arith.constant 0 : i32
    %c0_i32_0 = arith.constant 0 : i32
    %c0_i32_1 = arith.constant 0 : i32
    return %c0_i32, %c0_i32_0 : i32, i32
  }
  func.func @transform_2(%arg0: i32) -> (i32, i32) {
    %c0_i32 = arith.constant 0 : i32
    %c0_i32_0 = arith.constant 0 : i32
    %c0_i32_1 = arith.constant 0 : i32
    return %c0_i32, %c0_i32_0 : i32, i32
  }
  func.func @transform_3(%arg0: i32) -> (i32, i32, i32, i32) {
    %c0_i32 = arith.constant 0 : i32
    %c0_i32_0 = arith.constant 0 : i32
    %c0_i32_1 = arith.constant 0 : i32
    %c0_i32_2 = arith.constant 0 : i32
    return %arg0, %c0_i32, %c0_i32_0, %c0_i32_1 : i32, i32, i32, i32
  }
  func.func @transform_4(%arg0: i32) -> (i32, i32) {
    %c0_i32 = arith.constant 0 : i32
    %c0_i32_0 = arith.constant 0 : i32
    %c0_i32_1 = arith.constant 0 : i32
    return %c0_i32, %c0_i32_0 : i32, i32
  }
  func.func @transform_5(%arg0: i32) -> (i32, i32) {
    %c0_i32 = arith.constant 0 : i32
    %c0_i32_0 = arith.constant 0 : i32
    %c0_i32_1 = arith.constant 0 : i32
    return %c0_i32, %c0_i32_0 : i32, i32
  }
}

</mosaic_0001>

<llo_original>
// kernel: tpu_custom_call.1
$region0: #{tpu_custom_call.1}
  #allocation0 [shape = 'u32[]', space=smem, size = 0x4, offset = 0x4, fixed_abs, tag = 'smem constant byte address 0x4 - core index']
  #allocation1 [shape = 'u32[144,128]{1,0:T(1,128)}', space=vmem, size = 0x12000, scoped, tag = 'internal scratch']
  #allocation2 [shape = 'f32[16,16,36]{2,1,0:T(8,128)}', space=vmem, size = 0x20000, scoped, tag = 'scratch operand']
  %s0 = inlined_call_operand.vmem [shape: f32[2,16,16,4], index: 0, kind: input, shape index: {}]
  %s1 = inlined_call_operand.vmem [shape: f32[36,8], index: 1, kind: input, shape index: {}]
  %s2 = inlined_call_operand.vmem [shape: f32[1,8], index: 2, kind: input, shape index: {}]
  %s3 = inlined_call_operand.vmem [shape: f32[2,16,16,8], index: 3, kind: output, shape index: {0}]
  %s4 = inlined_call_operand.hbm [shape: f32[1,8], index: 4, kind: output, shape index: {1}]
  %s5 = inlined_call_operand.hbm [shape: f32[1,8], index: 5, kind: output, shape index: {2}]
  %6 = xla_tuple %s3, %s4, %s5
  %s7 = sld [smem:[#allocation0]]
  $region65: #{tpu_custom_call.1} parent=0
    _
  %s9 = ssub.s32 1, %s7
  %s10 = scalar_select 0, %s9, %s7
  $region1: #{tpu_custom_call.1} parent=0
    #allocation3 [shape = 'u8[512]{0}', space=vmem, size = 0x400, scoped, tag = 'output window, operand 1, single buffered']
    #allocation4 [shape = 's32[2]{0}', space=sflag, size = 0x8, scoped, tag = 'scoped memory for tpu_custom_call.1']
    #allocation5 [shape = 'u8[512]{0}', space=vmem, size = 0x400, scoped, tag = 'output window, operand 2, single buffered']
    #allocation6 [shape = 's32[1]{0}', space=sflag, size = 0x4, scoped, tag = 'scoped memory for tpu_custom_call.1']
    %11 = vsyncpa [#allocation4], 0
    %12 = vsyncpa [#allocation6], 0
    loop: start=0, step=1, limit=4
    $region2: #{tpu_custom_call.1} parent=1 // loop_pre_header
      _
    $region3: #{tpu_custom_call.1} parent=1 // loop_header
      %s14 = sphi 0, %s18
      %p15 = scmp.ge.s32.totalorder %s14, 4
      %s24 = sphi 0, %s26
      %s27 = sphi 0, %s24
      %s28 = sphi 0, %s27
      %s44 = sphi 0, %s28
      %s48 = sphi 0, %s48
      %s50 = sphi 0, %s48
      %s51 = sphi 0, %s50
      %s65 = sphi 0, %s51
      %s69 = sphi 0, %s69
      %s71 = sphi 0, %s69
      %s72 = sphi 0, %s71
      %s86 = sphi 0, %s72
      %s92 = sphi 0, %s94
      %s95 = sphi 0, %s92
      %s96 = sphi 0, %s95
      %s112 = sphi 0, %s96
      %s116 = sphi 0, %s116
      %s118 = sphi 0, %s116
      %s119 = sphi 0, %s118
      %s133 = sphi 0, %s119
      %s137 = sphi 0, %s137
      %s139 = sphi 0, %s137
      %s140 = sphi 0, %s139
      %s154 = sphi 0, %s140
    $region4: #{tpu_custom_call.1} parent=1 // loop_header_branch
      %17 = sbr.rel (%p15) target = $region8
    $region5: #{tpu_custom_call.1} parent=1 // loop_body
      %s19 = ssub.s32 %s14, 1
      %s20 = ssub.s32 %s14, 2
      %s21 = sadd.s32 %s14, 1
      %s22 = ssub.s32 %s14, %s21
      %p23 = scmp.eq.s32.totalorder %s22, 0
      %s25 = sadd.s32 %s24, 1
      %s26 = scalar_select %p23, %s24, %s25
      %p29 = pneg %p23
      %p30 = scmp.eq.s32.totalorder %s14, 1
      %p31 = por %p29, %p30
      %p32 = scmp.ne.s32.totalorder %s24, %s27
      %p33 = scmp.eq.s32.totalorder %s14, 0
      %p34 = por %p32, %p33
      %p35 = scmp.ne.s32.totalorder %s24, %s27
      %p36 = scmp.eq.s32.totalorder %s19, 1
      %p37 = por %p35, %p36
      %p38 = scmp.ne.s32.totalorder %s27, %s28
      %p39 = scmp.eq.s32.totalorder %s19, 0
      %p40 = por %p38, %p39
      %p41 = scmp.ne.s32.totalorder %s27, %s28
      %p42 = scmp.eq.s32.totalorder %s20, 1
      %p43 = por %p41, %p42
      %p45 = scmp.ne.s32.totalorder %s28, %s44
      %p46 = scmp.eq.s32.totalorder %s20, 0
      %p47 = por %p45, %p46
      %s49 = sadd.s32 %s48, 1
      %p52 = scmp.eq.s32.totalorder %s14, 1
      %p53 = scmp.ne.s32.totalorder %s48, %s50
      %p54 = scmp.eq.s32.totalorder %s14, 0
      %p55 = por %p53, %p54
      %p56 = scmp.ne.s32.totalorder %s48, %s50
      %p57 = scmp.eq.s32.totalorder %s19, 1
      %p58 = por %p56, %p57
      %p59 = scmp.ne.s32.totalorder %s50, %s51
      %p60 = scmp.eq.s32.totalorder %s19, 0
      %p61 = por %p59, %p60
      %p62 = scmp.ne.s32.totalorder %s50, %s51
      %p63 = scmp.eq.s32.totalorder %s20, 1
      %p64 = por %p62, %p63
      %p66 = scmp.ne.s32.totalorder %s51, %s65
      %p67 = scmp.eq.s32.totalorder %s20, 0
      %p68 = por %p66, %p67
      %s70 = sadd.s32 %s69, 1
      %p73 = scmp.eq.s32.totalorder %s14, 1
      %p74 = scmp.ne.s32.totalorder %s69, %s71
      %p75 = scmp.eq.s32.totalorder %s14, 0
      %p76 = por %p74, %p75
      %p77 = scmp.ne.s32.totalorder %s69, %s71
      %p78 = scmp.eq.s32.totalorder %s19, 1
      %p79 = por %p77, %p78
      %p80 = scmp.ne.s32.totalorder %s71, %s72
      %p81 = scmp.eq.s32.totalorder %s19, 0
      %p82 = por %p80, %p81
      %p83 = scmp.ne.s32.totalorder %s71, %s72
      %p84 = scmp.eq.s32.totalorder %s20, 1
      %p85 = por %p83, %p84
      %p87 = scmp.ne.s32.totalorder %s72, %s86
      %p88 = scmp.eq.s32.totalorder %s20, 0
      %p89 = por %p87, %p88
      %s90 = ssub.s32 %s14, %s21
      %p91 = scmp.eq.s32.totalorder %s90, 0
      %s93 = sadd.s32 %s92, 1
      %s94 = scalar_select %p91, %s92, %s93
      %p97 = pneg %p91
      %p98 = scmp.eq.s32.totalorder %s14, 1
      %p99 = por %p97, %p98
      %p100 = scmp.ne.s32.totalorder %s92, %s95
      %p101 = scmp.eq.s32.totalorder %s14, 0
      %p102 = por %p100, %p101
      %p103 = scmp.ne.s32.totalorder %s92, %s95
      %p104 = scmp.eq.s32.totalorder %s19, 1
      %p105 = por %p103, %p104
      %p106 = scmp.ne.s32.totalorder %s95, %s96
      %p107 = scmp.eq.s32.totalorder %s19, 0
      %p108 = por %p106, %p107
      %p109 = scmp.ne.s32.totalorder %s95, %s96
      %p110 = scmp.eq.s32.totalorder %s20, 1
      %p111 = por %p109, %p110
      %p113 = scmp.ne.s32.totalorder %s96, %s112
      %p114 = scmp.eq.s32.totalorder %s20, 0
      %p115 = por %p113, %p114
      %s117 = sadd.s32 %s116, 1
      %p120 = scmp.eq.s32.totalorder %s14, 1
      %p121 = scmp.ne.s32.totalorder %s116, %s118
      %p122 = scmp.eq.s32.totalorder %s14, 0
      %p123 = por %p121, %p122
      %p124 = scmp.ne.s32.totalorder %s116, %s118
      %p125 = scmp.eq.s32.totalorder %s19, 1
      %p126 = por %p124, %p125
      %p127 = scmp.ne.s32.totalorder %s118, %s119
      %p128 = scmp.eq.s32.totalorder %s19, 0
      %p129 = por %p127, %p128
      %p130 = scmp.ne.s32.totalorder %s118, %s119
      %p131 = scmp.eq.s32.totalorder %s20, 1
      %p132 = por %p130, %p131
      %p134 = scmp.ne.s32.totalorder %s119, %s133
      %p135 = scmp.eq.s32.totalorder %s20, 0
      %p136 = por %p134, %p135
      %s138 = sadd.s32 %s137, 1
      %p141 = scmp.eq.s32.totalorder %s14, 1
      %p142 = scmp.ne.s32.totalorder %s137, %s139
      %p143 = scmp.eq.s32.totalorder %s14, 0
      %p144 = por %p142, %p143
      %p145 = scmp.ne.s32.totalorder %s137, %s139
      %p146 = scmp.eq.s32.totalorder %s19, 1
      %p147 = por %p145, %p146
      %p148 = scmp.ne.s32.totalorder %s139, %s140
      %p149 = scmp.eq.s32.totalorder %s19, 0
      %p150 = por %p148, %p149
      %p151 = scmp.ne.s32.totalorder %s139, %s140
      %p152 = scmp.eq.s32.totalorder %s20, 1
      %p153 = por %p151, %p152
      %p155 = scmp.ne.s32.totalorder %s140, %s154
      %p156 = scmp.eq.s32.totalorder %s20, 0
      %p157 = por %p155, %p156
      %p158 = scmp.le.s32.totalorder 1, %s14
      %p159 = scmp.lt.s32.totalorder %s14, 3
      %p160 = pnand %p158, %p159
      %p161 = pneg %p160
      // Predicated region
      $region9: #{tpu_custom_call.1} parent=5 // pred_check
        _
      $region10: #{tpu_custom_call.1} parent=5 // pred_check_branch
        %163 = sbr.rel (%p160) target = $region12
      $region11: #{tpu_custom_call.1} parent=5 // pred_region
        %s164 = ssub.s32 %s14, 1
        // Predicated region
        $region13: #{tpu_custom_call.1} parent=11 // pred_check
          %p165 = pneg %p61
        $region14: #{tpu_custom_call.1} parent=11 // pred_check_branch
          %167 = sbr.rel (%p165) target = $region16
        $region15: #{tpu_custom_call.1} parent=11 // pred_region
          _
        $region16: #{tpu_custom_call.1} parent=11 // pred_fallthru
          _
        // Predicated region
        $region17: #{tpu_custom_call.1} parent=11 // pred_check
          %p168 = pneg %p82
        $region18: #{tpu_custom_call.1} parent=11 // pred_check_branch
          %170 = sbr.rel (%p168) target = $region20
        $region19: #{tpu_custom_call.1} parent=11 // pred_region
          _
        $region20: #{tpu_custom_call.1} parent=11 // pred_fallthru
          _
      $region12: #{tpu_custom_call.1} parent=5 // pred_fallthru
        _
      %p171 = scmp.lt.s32.totalorder %s14, 2
      // Predicated region
      $region21: #{tpu_custom_call.1} parent=5 // pred_check
        %p172 = pneg %p171
      $region22: #{tpu_custom_call.1} parent=5 // pred_check_branch
        %174 = sbr.rel (%p172) target = $region24
      $region23: #{tpu_custom_call.1} parent=5 // pred_region
        // Predicated region
        $region25: #{tpu_custom_call.1} parent=23 // pred_check
          %p175 = pneg %p34
        $region26: #{tpu_custom_call.1} parent=23 // pred_check_branch
          %177 = sbr.rel (%p175) target = $region28
        $region27: #{tpu_custom_call.1} parent=23 // pred_region
          %p178 = scmp.lt.s32.totalorder %s14, 1
          %s179 = scalar_select %p178, %s14, 1
          %s180 = smul.addr %s179, 32
          %s181 = smul.addr %s180, 8
          %s182 = scalar_lea.vmem %s0, %s181
        $region28: #{tpu_custom_call.1} parent=23 // pred_fallthru
          _
      $region24: #{tpu_custom_call.1} parent=5 // pred_fallthru
        _
      %p183 = scmp.le.s32.totalorder 1, %s14
      %p184 = scmp.lt.s32.totalorder %s14, 3
      %p185 = pnand %p183, %p184
      %p186 = pneg %p185
      // Predicated region
      $region29: #{tpu_custom_call.1} parent=5 // pred_check
        _
      $region30: #{tpu_custom_call.1} parent=5 // pred_check_branch
        %188 = sbr.rel (%p185) target = $region32
      $region31: #{tpu_custom_call.1} parent=5 // pred_region
        %s189 = ssub.s32 %s14, 1
        %p190 = scmp.lt.s32.totalorder %s19, 1
        %s191 = scalar_select %p190, %s19, 1
        %s192 = smul.addr %s191, 32
        %s193 = smul.addr %s192, 8
        %s194 = scalar_lea.vmem %s0, %s193
        %p195 = pneg %p40
        %p196 = pneg %p37
        %p197 = pneg %p61
        %p198 = pneg %p58
        %p199 = pneg %p82
        %p200 = pneg %p79
        %p201 = pneg %p108
        %p202 = pneg %p105
        %p203 = scmp.lt.s32.totalorder %s19, 1
        %s204 = scalar_select %p203, %s19, 1
        %s205 = smul.addr %s204, 32
        %s206 = smul.addr %s205, 8
        %s207 = scalar_lea.vmem %s3, %s206
        %p208 = pneg %p129
        %p209 = pneg %p126
        %p210 = pneg %p150
        %p211 = pneg %p147
        %p212 = scmp.lt.s32.totalorder %s19, 1
        %s213 = scalar_select %p212, %s19, 1
        %s214 = smul.addr %s213, 32
        %s215 = smul.addr %s214, 8
        %s216 = scalar_lea.vmem %s0, %s215
        %p217 = scmp.lt.s32.totalorder %s19, 1
        %s218 = scalar_select %p217, %s19, 1
        %s219 = smul.addr %s218, 32
        %s220 = smul.addr %s219, 8
        %s221 = scalar_lea.vmem %s3, %s220
        %v222 = vld [vmem:[%s216] sm:$0xff]
        %v223 = vld [vmem:[%s216 + $0x8] sm:$0xff]
        %v224 = vld [vmem:[%s216 + $0x10] sm:$0xff]
        %v225 = vld [vmem:[%s216 + $0x18] sm:$0xff]
        %v226 = vld [vmem:[%s216 + $0x20] sm:$0xff]
        %v227 = vld [vmem:[%s216 + $0x28] sm:$0xff]
        %v228 = vld [vmem:[%s216 + $0x30] sm:$0xff]
        %v229 = vld [vmem:[%s216 + $0x38] sm:$0xff]
        %v230 = vld [vmem:[%s216 + $0x40] sm:$0xff]
        %v231 = vld [vmem:[%s216 + $0x48] sm:$0xff]
        %v232 = vld [vmem:[%s216 + $0x50] sm:$0xff]
        %v233 = vld [vmem:[%s216 + $0x58] sm:$0xff]
        %v234 = vld [vmem:[%s216 + $0x60] sm:$0xff]
        %v235 = vld [vmem:[%s216 + $0x68] sm:$0xff]
        %v236 = vld [vmem:[%s216 + $0x70] sm:$0xff]
        %v237 = vld [vmem:[%s216 + $0x78] sm:$0xff]
        %v238 = vld [vmem:[%s216 + $0x80] sm:$0xff]
        %v239 = vld [vmem:[%s216 + $0x88] sm:$0xff]
        %v240 = vld [vmem:[%s216 + $0x90] sm:$0xff]
        %v241 = vld [vmem:[%s216 + $0x98] sm:$0xff]
        %v242 = vld [vmem:[%s216 + $0xa0] sm:$0xff]
        %v243 = vld [vmem:[%s216 + $0xa8] sm:$0xff]
        %v244 = vld [vmem:[%s216 + $0xb0] sm:$0xff]
        %v245 = vld [vmem:[%s216 + $0xb8] sm:$0xff]
        %v246 = vld [vmem:[%s216 + $0xc0] sm:$0xff]
        %v247 = vld [vmem:[%s216 + $0xc8] sm:$0xff]
        %v248 = vld [vmem:[%s216 + $0xd0] sm:$0xff]
        %v249 = vld [vmem:[%s216 + $0xd8] sm:$0xff]
        %v250 = vld [vmem:[%s216 + $0xe0] sm:$0xff]
        %v251 = vld [vmem:[%s216 + $0xe8] sm:$0xff]
        %v252 = vld [vmem:[%s216 + $0xf0] sm:$0xff]
        %v253 = vld [vmem:[%s216 + $0xf8] sm:$0xff]
        %p254 = scmp.eq.s32.totalorder %s19, 0
        // Predicated region
        $region33: #{tpu_custom_call.1} parent=31 // pred_check
          %p255 = pneg %p254
        $region34: #{tpu_custom_call.1} parent=31 // pred_check_branch
          %257 = sbr.rel (%p255) target = $region36
        $region35: #{tpu_custom_call.1} parent=31 // pred_region
          %vm258 = vcmask 57344
          %259 = vst.msk [vmem:[#allocation3] sm:$0x1] %vm258, 0.0
          %260 = vst.msk [vmem:[#allocation5] sm:$0x1] %vm258, 0.0
        $region36: #{tpu_custom_call.1} parent=31 // pred_fallthru
          _
        %vm261 = vcmask 293888
        %262 = vst.msk [vmem:[#allocation2] sm:$0xff] %vm261, 0.0
        %263 = vst.msk [vmem:[#allocation2 + $0x8] sm:$0xff] %vm261, 0.0
        %264 = vst.msk [vmem:[#allocation2 + $0x10] sm:$0xff] %vm261, 0.0
        %265 = vst.msk [vmem:[#allocation2 + $0x18] sm:$0xff] %vm261, 0.0
        %266 = vst.msk [vmem:[#allocation2 + $0x20] sm:$0xff] %vm261, 0.0
        %267 = vst.msk [vmem:[#allocation2 + $0x28] sm:$0xff] %vm261, 0.0
        %268 = vst.msk [vmem:[#allocation2 + $0x30] sm:$0xff] %vm261, 0.0
        %269 = vst.msk [vmem:[#allocation2 + $0x38] sm:$0xff] %vm261, 0.0
        %270 = vst.msk [vmem:[#allocation2 + $0x40] sm:$0xff] %vm261, 0.0
        %271 = vst.msk [vmem:[#allocation2 + $0x48] sm:$0xff] %vm261, 0.0
        %272 = vst.msk [vmem:[#allocation2 + $0x50] sm:$0xff] %vm261, 0.0
        %273 = vst.msk [vmem:[#allocation2 + $0x58] sm:$0xff] %vm261, 0.0
        %274 = vst.msk [vmem:[#allocation2 + $0x60] sm:$0xff] %vm261, 0.0
        %275 = vst.msk [vmem:[#allocation2 + $0x68] sm:$0xff] %vm261, 0.0
        %276 = vst.msk [vmem:[#allocation2 + $0x70] sm:$0xff] %vm261, 0.0
        %277 = vst.msk [vmem:[#allocation2 + $0x78] sm:$0xff] %vm261, 0.0
        %278 = vst.msk [vmem:[#allocation2 + $0x80] sm:$0xff] %vm261, 0.0
        %279 = vst.msk [vmem:[#allocation2 + $0x88] sm:$0xff] %vm261, 0.0
        %280 = vst.msk [vmem:[#allocation2 + $0x90] sm:$0xff] %vm261, 0.0
        %281 = vst.msk [vmem:[#allocation2 + $0x98] sm:$0xff] %vm261, 0.0
        %282 = vst.msk [vmem:[#allocation2 + $0xa0] sm:$0xff] %vm261, 0.0
        %283 = vst.msk [vmem:[#allocation2 + $0xa8] sm:$0xff] %vm261, 0.0
        %284 = vst.msk [vmem:[#allocation2 + $0xb0] sm:$0xff] %vm261, 0.0
        %285 = vst.msk [vmem:[#allocation2 + $0xb8] sm:$0xff] %vm261, 0.0
        %286 = vst.msk [vmem:[#allocation2 + $0xc0] sm:$0xff] %vm261, 0.0
        %287 = vst.msk [vmem:[#allocation2 + $0xc8] sm:$0xff] %vm261, 0.0
        %288 = vst.msk [vmem:[#allocation2 + $0xd0] sm:$0xff] %vm261, 0.0
        %289 = vst.msk [vmem:[#allocation2 + $0xd8] sm:$0xff] %vm261, 0.0
        %290 = vst.msk [vmem:[#allocation2 + $0xe0] sm:$0xff] %vm261, 0.0
        %291 = vst.msk [vmem:[#allocation2 + $0xe8] sm:$0xff] %vm261, 0.0
        %292 = vst.msk [vmem:[#allocation2 + $0xf0] sm:$0xff] %vm261, 0.0
        %293 = vst.msk [vmem:[#allocation2 + $0xf8] sm:$0xff] %vm261, 0.0
        %s294 = scalar_lea.vmem [#allocation2], 16
        %vm295 = vcmask 31744
        %296 = vst.msk [vmem:[%s294 + $0x1] sm:$0xff] %vm295, %v222
        %vm297 = vcmask 30720
        %298 = vst.msk [vmem:[%s294 + $0x9] sm:$0x7f] %vm297, %v223
        %299 = vst.msk [vmem:[%s294 + $0x11] sm:$0xff] %vm295, %v224
        %300 = vst.msk [vmem:[%s294 + $0x19] sm:$0x7f] %vm297, %v225
        %301 = vst.msk [vmem:[%s294 + $0x21] sm:$0xff] %vm295, %v226
        %302 = vst.msk [vmem:[%s294 + $0x29] sm:$0x7f] %vm297, %v227
        %303 = vst.msk [vmem:[%s294 + $0x31] sm:$0xff] %vm295, %v228
        %304 = vst.msk [vmem:[%s294 + $0x39] sm:$0x7f] %vm297, %v229
        %305 = vst.msk [vmem:[%s294 + $0x41] sm:$0xff] %vm295, %v230
        %306 = vst.msk [vmem:[%s294 + $0x49] sm:$0x7f] %vm297, %v231
        %307 = vst.msk [vmem:[%s294 + $0x51] sm:$0xff] %vm295, %v232
        %308 = vst.msk [vmem:[%s294 + $0x59] sm:$0x7f] %vm297, %v233
        %309 = vst.msk [vmem:[%s294 + $0x61] sm:$0xff] %vm295, %v234
        %310 = vst.msk [vmem:[%s294 + $0x69] sm:$0x7f] %vm297, %v235
        %311 = vst.msk [vmem:[%s294 + $0x71] sm:$0xff] %vm295, %v236
        %312 = vst.msk [vmem:[%s294 + $0x79] sm:$0x7f] %vm297, %v237
        %313 = vst.msk [vmem:[%s294 + $0x81] sm:$0xff] %vm295, %v238
        %314 = vst.msk [vmem:[%s294 + $0x89] sm:$0x7f] %vm297, %v239
        %315 = vst.msk [vmem:[%s294 + $0x91] sm:$0xff] %vm295, %v240
        %316 = vst.msk [vmem:[%s294 + $0x99] sm:$0x7f] %vm297, %v241
        %317 = vst.msk [vmem:[%s294 + $0xa1] sm:$0xff] %vm295, %v242
        %318 = vst.msk [vmem:[%s294 + $0xa9] sm:$0x7f] %vm297, %v243
        %319 = vst.msk [vmem:[%s294 + $0xb1] sm:$0xff] %vm295, %v244
        %320 = vst.msk [vmem:[%s294 + $0xb9] sm:$0x7f] %vm297, %v245
        %321 = vst.msk [vmem:[%s294 + $0xc1] sm:$0xff] %vm295, %v246
        %322 = vst.msk [vmem:[%s294 + $0xc9] sm:$0x7f] %vm297, %v247
        %323 = vst.msk [vmem:[%s294 + $0xd1] sm:$0xff] %vm295, %v248
        %324 = vst.msk [vmem:[%s294 + $0xd9] sm:$0x7f] %vm297, %v249
        %325 = vst.msk [vmem:[%s294 + $0xe1] sm:$0xff] %vm295, %v250
        %326 = vst.msk [vmem:[%s294 + $0xe9] sm:$0x7f] %vm297, %v251
        %357 = vrot.lane.b32.xlu0 %v222, 4
        %v358 = vpop.permute.xlu0 %357
        %359 = vrot.lane.b32.xlu0 %v223, 4
        %v360 = vpop.permute.xlu0 %359
        %361 = vrot.lane.b32.xlu0 %v224, 4
        %v362 = vpop.permute.xlu0 %361
        %363 = vrot.lane.b32.xlu0 %v225, 4
        %v364 = vpop.permute.xlu0 %363
        %365 = vrot.lane.b32.xlu0 %v226, 4
        %v366 = vpop.permute.xlu0 %365
        %367 = vrot.lane.b32.xlu0 %v227, 4
        %v368 = vpop.permute.xlu0 %367
        %369 = vrot.lane.b32.xlu0 %v228, 4
        %v370 = vpop.permute.xlu0 %369
        %371 = vrot.lane.b32.xlu0 %v229, 4
        %v372 = vpop.permute.xlu0 %371
        %373 = vrot.lane.b32.xlu0 %v230, 4
        %v374 = vpop.permute.xlu0 %373
        %375 = vrot.lane.b32.xlu0 %v231, 4
        %v376 = vpop.permute.xlu0 %375
        %377 = vrot.lane.b32.xlu0 %v232, 4
        %v378 = vpop.permute.xlu0 %377
        %379 = vrot.lane.b32.xlu0 %v233, 4
        %v380 = vpop.permute.xlu0 %379
        %381 = vrot.lane.b32.xlu0 %v234, 4
        %v382 = vpop.permute.xlu0 %381
        %383 = vrot.lane.b32.xlu0 %v235, 4
        %v384 = vpop.permute.xlu0 %383
        %385 = vrot.lane.b32.xlu0 %v236, 4
        %v386 = vpop.permute.xlu0 %385
        %387 = vrot.lane.b32.xlu0 %v237, 4
        %v388 = vpop.permute.xlu0 %387
        %389 = vrot.lane.b32.xlu0 %v238, 4
        %v390 = vpop.permute.xlu0 %389
        %391 = vrot.lane.b32.xlu0 %v239, 4
        %v392 = vpop.permute.xlu0 %391
        %393 = vrot.lane.b32.xlu0 %v240, 4
        %v394 = vpop.permute.xlu0 %393
        %395 = vrot.lane.b32.xlu0 %v241, 4
        %v396 = vpop.permute.xlu0 %395
        %397 = vrot.lane.b32.xlu0 %v242, 4
        %v398 = vpop.permute.xlu0 %397
        %399 = vrot.lane.b32.xlu0 %v243, 4
        %v400 = vpop.permute.xlu0 %399
        %401 = vrot.lane.b32.xlu0 %v244, 4
        %v402 = vpop.permute.xlu0 %401
        %403 = vrot.lane.b32.xlu0 %v245, 4
        %v404 = vpop.permute.xlu0 %403
        %405 = vrot.lane.b32.xlu0 %v246, 4
        %v406 = vpop.permute.xlu0 %405
        %407 = vrot.lane.b32.xlu0 %v247, 4
        %v408 = vpop.permute.xlu0 %407
        %409 = vrot.lane.b32.xlu0 %v248, 4
        %v410 = vpop.permute.xlu0 %409
        %411 = vrot.lane.b32.xlu0 %v249, 4
        %v412 = vpop.permute.xlu0 %411
        %413 = vrot.lane.b32.xlu0 %v250, 4
        %v414 = vpop.permute.xlu0 %413
        %415 = vrot.lane.b32.xlu0 %v251, 4
        %v416 = vpop.permute.xlu0 %415
        %vm447 = vcmask 64544
        %448 = vst.msk [vmem:[%s294] sm:$0xff] %vm447, %v358
        %449 = vst.msk [vmem:[%s294 + $0x8] sm:$0xff] %vm447, %v360
        %450 = vst.msk [vmem:[%s294 + $0x10] sm:$0xff] %vm447, %v362
        %451 = vst.msk [vmem:[%s294 + $0x18] sm:$0xff] %vm447, %v364
        %452 = vst.msk [vmem:[%s294 + $0x20] sm:$0xff] %vm447, %v366
        %453 = vst.msk [vmem:[%s294 + $0x28] sm:$0xff] %vm447, %v368
        %454 = vst.msk [vmem:[%s294 + $0x30] sm:$0xff] %vm447, %v370
        %455 = vst.msk [vmem:[%s294 + $0x38] sm:$0xff] %vm447, %v372
        %456 = vst.msk [vmem:[%s294 + $0x40] sm:$0xff] %vm447, %v374
        %457 = vst.msk [vmem:[%s294 + $0x48] sm:$0xff] %vm447, %v376
        %458 = vst.msk [vmem:[%s294 + $0x50] sm:$0xff] %vm447, %v378
        %459 = vst.msk [vmem:[%s294 + $0x58] sm:$0xff] %vm447, %v380
        %460 = vst.msk [vmem:[%s294 + $0x60] sm:$0xff] %vm447, %v382
        %461 = vst.msk [vmem:[%s294 + $0x68] sm:$0xff] %vm447, %v384
        %462 = vst.msk [vmem:[%s294 + $0x70] sm:$0xff] %vm447, %v386
        %463 = vst.msk [vmem:[%s294 + $0x78] sm:$0xff] %vm447, %v388
        %464 = vst.msk [vmem:[%s294 + $0x80] sm:$0xff] %vm447, %v390
        %465 = vst.msk [vmem:[%s294 + $0x88] sm:$0xff] %vm447, %v392
        %466 = vst.msk [vmem:[%s294 + $0x90] sm:$0xff] %vm447, %v394
        %467 = vst.msk [vmem:[%s294 + $0x98] sm:$0xff] %vm447, %v396
        %468 = vst.msk [vmem:[%s294 + $0xa0] sm:$0xff] %vm447, %v398
        %469 = vst.msk [vmem:[%s294 + $0xa8] sm:$0xff] %vm447, %v400
        %470 = vst.msk [vmem:[%s294 + $0xb0] sm:$0xff] %vm447, %v402
        %471 = vst.msk [vmem:[%s294 + $0xb8] sm:$0xff] %vm447, %v404
        %472 = vst.msk [vmem:[%s294 + $0xc0] sm:$0xff] %vm447, %v406
        %473 = vst.msk [vmem:[%s294 + $0xc8] sm:$0xff] %vm447, %v408
        %474 = vst.msk [vmem:[%s294 + $0xd0] sm:$0xff] %vm447, %v410
        %475 = vst.msk [vmem:[%s294 + $0xd8] sm:$0xff] %vm447, %v412
        %476 = vst.msk [vmem:[%s294 + $0xe0] sm:$0xff] %vm447, %v414
        %477 = vst.msk [vmem:[%s294 + $0xe8] sm:$0xff] %vm447, %v416
        %478 = vrot.lane.b32.xlu0 %v222, 8
        %v479 = vpop.permute.xlu0 %478
        %480 = vrot.lane.b32.xlu0 %v223, 8
        %v481 = vpop.permute.xlu0 %480
        %482 = vrot.lane.b32.xlu0 %v224, 8
        %v483 = vpop.permute.xlu0 %482
        %484 = vrot.lane.b32.xlu0 %v225, 8
        %v485 = vpop.permute.xlu0 %484
        %486 = vrot.lane.b32.xlu0 %v226, 8
        %v487 = vpop.permute.xlu0 %486
        %488 = vrot.lane.b32.xlu0 %v227, 8
        %v489 = vpop.permute.xlu0 %488
        %490 = vrot.lane.b32.xlu0 %v228, 8
        %v491 = vpop.permute.xlu0 %490
        %492 = vrot.lane.b32.xlu0 %v229, 8
        %v493 = vpop.permute.xlu0 %492
        %494 = vrot.lane.b32.xlu0 %v230, 8
        %v495 = vpop.permute.xlu0 %494
        %496 = vrot.lane.b32.xlu0 %v231, 8
        %v497 = vpop.permute.xlu0 %496
        %498 = vrot.lane.b32.xlu0 %v232, 8
        %v499 = vpop.permute.xlu0 %498
        %500 = vrot.lane.b32.xlu0 %v233, 8
        %v501 = vpop.permute.xlu0 %500
        %502 = vrot.lane.b32.xlu0 %v234, 8
        %v503 = vpop.permute.xlu0 %502
        %504 = vrot.lane.b32.xlu0 %v235, 8
        %v505 = vpop.permute.xlu0 %504
        %506 = vrot.lane.b32.xlu0 %v236, 8
        %v507 = vpop.permute.xlu0 %506
        %508 = vrot.lane.b32.xlu0 %v237, 8
        %v509 = vpop.permute.xlu0 %508
        %510 = vrot.lane.b32.xlu0 %v238, 8
        %v511 = vpop.permute.xlu0 %510
        %512 = vrot.lane.b32.xlu0 %v239, 8
        %v513 = vpop.permute.xlu0 %512
        %514 = vrot.lane.b32.xlu0 %v240, 8
        %v515 = vpop.permute.xlu0 %514
        %516 = vrot.lane.b32.xlu0 %v241, 8
        %v517 = vpop.permute.xlu0 %516
        %518 = vrot.lane.b32.xlu0 %v242, 8
        %v519 = vpop.permute.xlu0 %518
        %520 = vrot.lane.b32.xlu0 %v243, 8
        %v521 = vpop.permute.xlu0 %520
        %522 = vrot.lane.b32.xlu0 %v244, 8
        %v523 = vpop.permute.xlu0 %522
        %524 = vrot.lane.b32.xlu0 %v245, 8
        %v525 = vpop.permute.xlu0 %524
        %526 = vrot.lane.b32.xlu0 %v246, 8
        %v527 = vpop.permute.xlu0 %526
        %528 = vrot.lane.b32.xlu0 %v247, 8
        %v529 = vpop.permute.xlu0 %528
        %530 = vrot.lane.b32.xlu0 %v248, 8
        %v531 = vpop.permute.xlu0 %530
        %532 = vrot.lane.b32.xlu0 %v249, 8
        %v533 = vpop.permute.xlu0 %532
        %534 = vrot.lane.b32.xlu0 %v250, 8
        %v535 = vpop.permute.xlu0 %534
        %536 = vrot.lane.b32.xlu0 %v251, 8
        %v537 = vpop.permute.xlu0 %536
        %vm568 = vcmask 97345
        %569 = vst.msk [vmem:[%s294 - $0x1] sm:$0xfe] %vm568, %v479
        %vm570 = vcmask 97344
        %571 = vst.msk [vmem:[%s294 + $0x7] sm:$0xff] %vm570, %v481
        %572 = vst.msk [vmem:[%s294 + $0xf] sm:$0xfe] %vm568, %v483
        %573 = vst.msk [vmem:[%s294 + $0x17] sm:$0xff] %vm570, %v485
        %574 = vst.msk [vmem:[%s294 + $0x1f] sm:$0xfe] %vm568, %v487
        %575 = vst.msk [vmem:[%s294 + $0x27] sm:$0xff] %vm570, %v489
        %576 = vst.msk [vmem:[%s294 + $0x2f] sm:$0xfe] %vm568, %v491
        %577 = vst.msk [vmem:[%s294 + $0x37] sm:$0xff] %vm570, %v493
        %578 = vst.msk [vmem:[%s294 + $0x3f] sm:$0xfe] %vm568, %v495
        %579 = vst.msk [vmem:[%s294 + $0x47] sm:$0xff] %vm570, %v497
        %580 = vst.msk [vmem:[%s294 + $0x4f] sm:$0xfe] %vm568, %v499
        %581 = vst.msk [vmem:[%s294 + $0x57] sm:$0xff] %vm570, %v501
        %582 = vst.msk [vmem:[%s294 + $0x5f] sm:$0xfe] %vm568, %v503
        %583 = vst.msk [vmem:[%s294 + $0x67] sm:$0xff] %vm570, %v505
        %584 = vst.msk [vmem:[%s294 + $0x6f] sm:$0xfe] %vm568, %v507
        %585 = vst.msk [vmem:[%s294 + $0x77] sm:$0xff] %vm570, %v509
        %586 = vst.msk [vmem:[%s294 + $0x7f] sm:$0xfe] %vm568, %v511
        %587 = vst.msk [vmem:[%s294 + $0x87] sm:$0xff] %vm570, %v513
        %588 = vst.msk [vmem:[%s294 + $0x8f] sm:$0xfe] %vm568, %v515
        %589 = vst.msk [vmem:[%s294 + $0x97] sm:$0xff] %vm570, %v517
        %590 = vst.msk [vmem:[%s294 + $0x9f] sm:$0xfe] %vm568, %v519
        %591 = vst.msk [vmem:[%s294 + $0xa7] sm:$0xff] %vm570, %v521
        %592 = vst.msk [vmem:[%s294 + $0xaf] sm:$0xfe] %vm568, %v523
        %593 = vst.msk [vmem:[%s294 + $0xb7] sm:$0xff] %vm570, %v525
        %594 = vst.msk [vmem:[%s294 + $0xbf] sm:$0xfe] %vm568, %v527
        %595 = vst.msk [vmem:[%s294 + $0xc7] sm:$0xff] %vm570, %v529
        %596 = vst.msk [vmem:[%s294 + $0xcf] sm:$0xfe] %vm568, %v531
        %597 = vst.msk [vmem:[%s294 + $0xd7] sm:$0xff] %vm570, %v533
        %598 = vst.msk [vmem:[%s294 + $0xdf] sm:$0xfe] %vm568, %v535
        %599 = vst.msk [vmem:[%s294 + $0xe7] sm:$0xff] %vm570, %v537
        %602 = vrot.lane.b32.xlu0 %v222, 12
        %v603 = vpop.permute.xlu0 %602
        %604 = vrot.lane.b32.xlu0 %v223, 12
        %v605 = vpop.permute.xlu0 %604
        %606 = vrot.lane.b32.xlu0 %v224, 12
        %v607 = vpop.permute.xlu0 %606
        %608 = vrot.lane.b32.xlu0 %v225, 12
        %v609 = vpop.permute.xlu0 %608
        %610 = vrot.lane.b32.xlu0 %v226, 12
        %v611 = vpop.permute.xlu0 %610
        %612 = vrot.lane.b32.xlu0 %v227, 12
        %v613 = vpop.permute.xlu0 %612
        %614 = vrot.lane.b32.xlu0 %v228, 12
        %v615 = vpop.permute.xlu0 %614
        %616 = vrot.lane.b32.xlu0 %v229, 12
        %v617 = vpop.permute.xlu0 %616
        %618 = vrot.lane.b32.xlu0 %v230, 12
        %v619 = vpop.permute.xlu0 %618
        %620 = vrot.lane.b32.xlu0 %v231, 12
        %v621 = vpop.permute.xlu0 %620
        %622 = vrot.lane.b32.xlu0 %v232, 12
        %v623 = vpop.permute.xlu0 %622
        %624 = vrot.lane.b32.xlu0 %v233, 12
        %v625 = vpop.permute.xlu0 %624
        %626 = vrot.lane.b32.xlu0 %v234, 12
        %v627 = vpop.permute.xlu0 %626
        %628 = vrot.lane.b32.xlu0 %v235, 12
        %v629 = vpop.permute.xlu0 %628
        %630 = vrot.lane.b32.xlu0 %v236, 12
        %v631 = vpop.permute.xlu0 %630
        %632 = vrot.lane.b32.xlu0 %v237, 12
        %v633 = vpop.permute.xlu0 %632
        %634 = vrot.lane.b32.xlu0 %v238, 12
        %v635 = vpop.permute.xlu0 %634
        %636 = vrot.lane.b32.xlu0 %v239, 12
        %v637 = vpop.permute.xlu0 %636
        %638 = vrot.lane.b32.xlu0 %v240, 12
        %v639 = vpop.permute.xlu0 %638
        %640 = vrot.lane.b32.xlu0 %v241, 12
        %v641 = vpop.permute.xlu0 %640
        %642 = vrot.lane.b32.xlu0 %v242, 12
        %v643 = vpop.permute.xlu0 %642
        %644 = vrot.lane.b32.xlu0 %v243, 12
        %v645 = vpop.permute.xlu0 %644
        %646 = vrot.lane.b32.xlu0 %v244, 12
        %v647 = vpop.permute.xlu0 %646
        %648 = vrot.lane.b32.xlu0 %v245, 12
        %v649 = vpop.permute.xlu0 %648
        %650 = vrot.lane.b32.xlu0 %v246, 12
        %v651 = vpop.permute.xlu0 %650
        %652 = vrot.lane.b32.xlu0 %v247, 12
        %v653 = vpop.permute.xlu0 %652
        %654 = vrot.lane.b32.xlu0 %v248, 12
        %v655 = vpop.permute.xlu0 %654
        %656 = vrot.lane.b32.xlu0 %v249, 12
        %v657 = vpop.permute.xlu0 %656
        %658 = vrot.lane.b32.xlu0 %v250, 12
        %v659 = vpop.permute.xlu0 %658
        %660 = vrot.lane.b32.xlu0 %v251, 12
        %v661 = vpop.permute.xlu0 %660
        %662 = vrot.lane.b32.xlu0 %v252, 12
        %v663 = vpop.permute.xlu0 %662
        %664 = vrot.lane.b32.xlu0 %v253, 12
        %v665 = vpop.permute.xlu0 %664
        %vm698 = vcmask 130144
        %699 = vst.msk [vmem:[#allocation2 + $0x1] sm:$0xff] %vm698, %v603
        %vm700 = vcmask 129120
        %701 = vst.msk [vmem:[#allocation2 + $0x9] sm:$0x7f] %vm700, %v605
        %702 = vst.msk [vmem:[#allocation2 + $0x11] sm:$0xff] %vm698, %v607
        %703 = vst.msk [vmem:[#allocation2 + $0x19] sm:$0x7f] %vm700, %v609
        %704 = vst.msk [vmem:[#allocation2 + $0x21] sm:$0xff] %vm698, %v611
        %705 = vst.msk [vmem:[#allocation2 + $0x29] sm:$0x7f] %vm700, %v613
        %706 = vst.msk [vmem:[#allocation2 + $0x31] sm:$0xff] %vm698, %v615
        %707 = vst.msk [vmem:[#allocation2 + $0x39] sm:$0x7f] %vm700, %v617
        %708 = vst.msk [vmem:[#allocation2 + $0x41] sm:$0xff] %vm698, %v619
        %709 = vst.msk [vmem:[#allocation2 + $0x49] sm:$0x7f] %vm700, %v621
        %710 = vst.msk [vmem:[#allocation2 + $0x51] sm:$0xff] %vm698, %v623
        %711 = vst.msk [vmem:[#allocation2 + $0x59] sm:$0x7f] %vm700, %v625
        %712 = vst.msk [vmem:[#allocation2 + $0x61] sm:$0xff] %vm698, %v627
        %713 = vst.msk [vmem:[#allocation2 + $0x69] sm:$0x7f] %vm700, %v629
        %714 = vst.msk [vmem:[#allocation2 + $0x71] sm:$0xff] %vm698, %v631
        %715 = vst.msk [vmem:[#allocation2 + $0x79] sm:$0x7f] %vm700, %v633
        %716 = vst.msk [vmem:[#allocation2 + $0x81] sm:$0xff] %vm698, %v635
        %717 = vst.msk [vmem:[#allocation2 + $0x89] sm:$0x7f] %vm700, %v637
        %718 = vst.msk [vmem:[#allocation2 + $0x91] sm:$0xff] %vm698, %v639
        %719 = vst.msk [vmem:[#allocation2 + $0x99] sm:$0x7f] %vm700, %v641
        %720 = vst.msk [vmem:[#allocation2 + $0xa1] sm:$0xff] %vm698, %v643
        %721 = vst.msk [vmem:[#allocation2 + $0xa9] sm:$0x7f] %vm700, %v645
        %722 = vst.msk [vmem:[#allocation2 + $0xb1] sm:$0xff] %vm698, %v647
        %723 = vst.msk [vmem:[#allocation2 + $0xb9] sm:$0x7f] %vm700, %v649
        %724 = vst.msk [vmem:[#allocation2 + $0xc1] sm:$0xff] %vm698, %v651
        %725 = vst.msk [vmem:[#allocation2 + $0xc9] sm:$0x7f] %vm700, %v653
        %726 = vst.msk [vmem:[#allocation2 + $0xd1] sm:$0xff] %vm698, %v655
        %727 = vst.msk [vmem:[#allocation2 + $0xd9] sm:$0x7f] %vm700, %v657
        %728 = vst.msk [vmem:[#allocation2 + $0xe1] sm:$0xff] %vm698, %v659
        %729 = vst.msk [vmem:[#allocation2 + $0xe9] sm:$0x7f] %vm700, %v661
        %730 = vst.msk [vmem:[#allocation2 + $0xf1] sm:$0xff] %vm698, %v663
        %731 = vst.msk [vmem:[#allocation2 + $0xf9] sm:$0x7f] %vm700, %v665
        %732 = vrot.lane.b32.xlu0 %v222, 16
        %v733 = vpop.permute.xlu0 %732
        %734 = vrot.lane.b32.xlu0 %v223, 16
        %v735 = vpop.permute.xlu0 %734
        %736 = vrot.lane.b32.xlu0 %v224, 16
        %v737 = vpop.permute.xlu0 %736
        %738 = vrot.lane.b32.xlu0 %v225, 16
        %v739 = vpop.permute.xlu0 %738
        %740 = vrot.lane.b32.xlu0 %v226, 16
        %v741 = vpop.permute.xlu0 %740
        %742 = vrot.lane.b32.xlu0 %v227, 16
        %v743 = vpop.permute.xlu0 %742
        %744 = vrot.lane.b32.xlu0 %v228, 16
        %v745 = vpop.permute.xlu0 %744
        %746 = vrot.lane.b32.xlu0 %v229, 16
        %v747 = vpop.permute.xlu0 %746
        %748 = vrot.lane.b32.xlu0 %v230, 16
        %v749 = vpop.permute.xlu0 %748
        %750 = vrot.lane.b32.xlu0 %v231, 16
        %v751 = vpop.permute.xlu0 %750
        %752 = vrot.lane.b32.xlu0 %v232, 16
        %v753 = vpop.permute.xlu0 %752
        %754 = vrot.lane.b32.xlu0 %v233, 16
        %v755 = vpop.permute.xlu0 %754
        %756 = vrot.lane.b32.xlu0 %v234, 16
        %v757 = vpop.permute.xlu0 %756
        %758 = vrot.lane.b32.xlu0 %v235, 16
        %v759 = vpop.permute.xlu0 %758
        %760 = vrot.lane.b32.xlu0 %v236, 16
        %v761 = vpop.permute.xlu0 %760
        %762 = vrot.lane.b32.xlu0 %v237, 16
        %v763 = vpop.permute.xlu0 %762
        %764 = vrot.lane.b32.xlu0 %v238, 16
        %v765 = vpop.permute.xlu0 %764
        %766 = vrot.lane.b32.xlu0 %v239, 16
        %v767 = vpop.permute.xlu0 %766
        %768 = vrot.lane.b32.xlu0 %v240, 16
        %v769 = vpop.permute.xlu0 %768
        %770 = vrot.lane.b32.xlu0 %v241, 16
        %v771 = vpop.permute.xlu0 %770
        %772 = vrot.lane.b32.xlu0 %v242, 16
        %v773 = vpop.permute.xlu0 %772
        %774 = vrot.lane.b32.xlu0 %v243, 16
        %v775 = vpop.permute.xlu0 %774
        %776 = vrot.lane.b32.xlu0 %v244, 16
        %v777 = vpop.permute.xlu0 %776
        %778 = vrot.lane.b32.xlu0 %v245, 16
        %v779 = vpop.permute.xlu0 %778
        %780 = vrot.lane.b32.xlu0 %v246, 16
        %v781 = vpop.permute.xlu0 %780
        %782 = vrot.lane.b32.xlu0 %v247, 16
        %v783 = vpop.permute.xlu0 %782
        %784 = vrot.lane.b32.xlu0 %v248, 16
        %v785 = vpop.permute.xlu0 %784
        %786 = vrot.lane.b32.xlu0 %v249, 16
        %v787 = vpop.permute.xlu0 %786
        %788 = vrot.lane.b32.xlu0 %v250, 16
        %v789 = vpop.permute.xlu0 %788
        %790 = vrot.lane.b32.xlu0 %v251, 16
        %v791 = vpop.permute.xlu0 %790
        %792 = vrot.lane.b32.xlu0 %v252, 16
        %v793 = vpop.permute.xlu0 %792
        %794 = vrot.lane.b32.xlu0 %v253, 16
        %v795 = vpop.permute.xlu0 %794
        %vm828 = vcmask 162944
        %829 = vst.msk [vmem:[#allocation2] sm:$0xff] %vm828, %v733
        %830 = vst.msk [vmem:[#allocation2 + $0x8] sm:$0xff] %vm828, %v735
        %831 = vst.msk [vmem:[#allocation2 + $0x10] sm:$0xff] %vm828, %v737
        %832 = vst.msk [vmem:[#allocation2 + $0x18] sm:$0xff] %vm828, %v739
        %833 = vst.msk [vmem:[#allocation2 + $0x20] sm:$0xff] %vm828, %v741
        %834 = vst.msk [vmem:[#allocation2 + $0x28] sm:$0xff] %vm828, %v743
        %835 = vst.msk [vmem:[#allocation2 + $0x30] sm:$0xff] %vm828, %v745
        %836 = vst.msk [vmem:[#allocation2 + $0x38] sm:$0xff] %vm828, %v747
        %837 = vst.msk [vmem:[#allocation2 + $0x40] sm:$0xff] %vm828, %v749
        %838 = vst.msk [vmem:[#allocation2 + $0x48] sm:$0xff] %vm828, %v751
        %839 = vst.msk [vmem:[#allocation2 + $0x50] sm:$0xff] %vm828, %v753
        %840 = vst.msk [vmem:[#allocation2 + $0x58] sm:$0xff] %vm828, %v755
        %841 = vst.msk [vmem:[#allocation2 + $0x60] sm:$0xff] %vm828, %v757
        %842 = vst.msk [vmem:[#allocation2 + $0x68] sm:$0xff] %vm828, %v759
        %843 = vst.msk [vmem:[#allocation2 + $0x70] sm:$0xff] %vm828, %v761
        %844 = vst.msk [vmem:[#allocation2 + $0x78] sm:$0xff] %vm828, %v763
        %845 = vst.msk [vmem:[#allocation2 + $0x80] sm:$0xff] %vm828, %v765
        %846 = vst.msk [vmem:[#allocation2 + $0x88] sm:$0xff] %vm828, %v767
        %847 = vst.msk [vmem:[#allocation2 + $0x90] sm:$0xff] %vm828, %v769
        %848 = vst.msk [vmem:[#allocation2 + $0x98] sm:$0xff] %vm828, %v771
        %849 = vst.msk [vmem:[#allocation2 + $0xa0] sm:$0xff] %vm828, %v773
        %850 = vst.msk [vmem:[#allocation2 + $0xa8] sm:$0xff] %vm828, %v775
        %851 = vst.msk [vmem:[#allocation2 + $0xb0] sm:$0xff] %vm828, %v777
        %852 = vst.msk [vmem:[#allocation2 + $0xb8] sm:$0xff] %vm828, %v779
        %853 = vst.msk [vmem:[#allocation2 + $0xc0] sm:$0xff] %vm828, %v781
        %854 = vst.msk [vmem:[#allocation2 + $0xc8] sm:$0xff] %vm828, %v783
        %855 = vst.msk [vmem:[#allocation2 + $0xd0] sm:$0xff] %vm828, %v785
        %856 = vst.msk [vmem:[#allocation2 + $0xd8] sm:$0xff] %vm828, %v787
        %857 = vst.msk [vmem:[#allocation2 + $0xe0] sm:$0xff] %vm828, %v789
        %858 = vst.msk [vmem:[#allocation2 + $0xe8] sm:$0xff] %vm828, %v791
        %859 = vst.msk [vmem:[#allocation2 + $0xf0] sm:$0xff] %vm828, %v793
        %860 = vst.msk [vmem:[#allocation2 + $0xf8] sm:$0xff] %vm828, %v795
        %861 = vrot.lane.b32.xlu0 %v222, 20
        %v862 = vpop.permute.xlu0 %861
        %863 = vrot.lane.b32.xlu0 %v223, 20
        %v864 = vpop.permute.xlu0 %863
        %865 = vrot.lane.b32.xlu0 %v224, 20
        %v866 = vpop.permute.xlu0 %865
        %867 = vrot.lane.b32.xlu0 %v225, 20
        %v868 = vpop.permute.xlu0 %867
        %869 = vrot.lane.b32.xlu0 %v226, 20
        %v870 = vpop.permute.xlu0 %869
        %871 = vrot.lane.b32.xlu0 %v227, 20
        %v872 = vpop.permute.xlu0 %871
        %873 = vrot.lane.b32.xlu0 %v228, 20
        %v874 = vpop.permute.xlu0 %873
        %875 = vrot.lane.b32.xlu0 %v229, 20
        %v876 = vpop.permute.xlu0 %875
        %877 = vrot.lane.b32.xlu0 %v230, 20
        %v878 = vpop.permute.xlu0 %877
        %879 = vrot.lane.b32.xlu0 %v231, 20
        %v880 = vpop.permute.xlu0 %879
        %881 = vrot.lane.b32.xlu0 %v232, 20
        %v882 = vpop.permute.xlu0 %881
        %883 = vrot.lane.b32.xlu0 %v233, 20
        %v884 = vpop.permute.xlu0 %883
        %885 = vrot.lane.b32.xlu0 %v234, 20
        %v886 = vpop.permute.xlu0 %885
        %887 = vrot.lane.b32.xlu0 %v235, 20
        %v888 = vpop.permute.xlu0 %887
        %889 = vrot.lane.b32.xlu0 %v236, 20
        %v890 = vpop.permute.xlu0 %889
        %891 = vrot.lane.b32.xlu0 %v237, 20
        %v892 = vpop.permute.xlu0 %891
        %893 = vrot.lane.b32.xlu0 %v238, 20
        %v894 = vpop.permute.xlu0 %893
        %895 = vrot.lane.b32.xlu0 %v239, 20
        %v896 = vpop.permute.xlu0 %895
        %897 = vrot.lane.b32.xlu0 %v240, 20
        %v898 = vpop.permute.xlu0 %897
        %899 = vrot.lane.b32.xlu0 %v241, 20
        %v900 = vpop.permute.xlu0 %899
        %901 = vrot.lane.b32.xlu0 %v242, 20
        %v902 = vpop.permute.xlu0 %901
        %903 = vrot.lane.b32.xlu0 %v243, 20
        %v904 = vpop.permute.xlu0 %903
        %905 = vrot.lane.b32.xlu0 %v244, 20
        %v906 = vpop.permute.xlu0 %905
        %907 = vrot.lane.b32.xlu0 %v245, 20
        %v908 = vpop.permute.xlu0 %907
        %909 = vrot.lane.b32.xlu0 %v246, 20
        %v910 = vpop.permute.xlu0 %909
        %911 = vrot.lane.b32.xlu0 %v247, 20
        %v912 = vpop.permute.xlu0 %911
        %913 = vrot.lane.b32.xlu0 %v248, 20
        %v914 = vpop.permute.xlu0 %913
        %915 = vrot.lane.b32.xlu0 %v249, 20
        %v916 = vpop.permute.xlu0 %915
        %917 = vrot.lane.b32.xlu0 %v250, 20
        %v918 = vpop.permute.xlu0 %917
        %919 = vrot.lane.b32.xlu0 %v251, 20
        %v920 = vpop.permute.xlu0 %919
        %921 = vrot.lane.b32.xlu0 %v252, 20
        %v922 = vpop.permute.xlu0 %921
        %923 = vrot.lane.b32.xlu0 %v253, 20
        %v924 = vpop.permute.xlu0 %923
        %vm957 = vcmask 195745
        %958 = vst.msk [vmem:[#allocation2 - $0x1] sm:$0xfe] %vm957, %v862
        %vm959 = vcmask 195744
        %960 = vst.msk [vmem:[#allocation2 + $0x7] sm:$0xff] %vm959, %v864
        %961 = vst.msk [vmem:[#allocation2 + $0xf] sm:$0xfe] %vm957, %v866
        %962 = vst.msk [vmem:[#allocation2 + $0x17] sm:$0xff] %vm959, %v868
        %963 = vst.msk [vmem:[#allocation2 + $0x1f] sm:$0xfe] %vm957, %v870
        %964 = vst.msk [vmem:[#allocation2 + $0x27] sm:$0xff] %vm959, %v872
        %965 = vst.msk [vmem:[#allocation2 + $0x2f] sm:$0xfe] %vm957, %v874
        %966 = vst.msk [vmem:[#allocation2 + $0x37] sm:$0xff] %vm959, %v876
        %967 = vst.msk [vmem:[#allocation2 + $0x3f] sm:$0xfe] %vm957, %v878
        %968 = vst.msk [vmem:[#allocation2 + $0x47] sm:$0xff] %vm959, %v880
        %969 = vst.msk [vmem:[#allocation2 + $0x4f] sm:$0xfe] %vm957, %v882
        %970 = vst.msk [vmem:[#allocation2 + $0x57] sm:$0xff] %vm959, %v884
        %971 = vst.msk [vmem:[#allocation2 + $0x5f] sm:$0xfe] %vm957, %v886
        %972 = vst.msk [vmem:[#allocation2 + $0x67] sm:$0xff] %vm959, %v888
        %973 = vst.msk [vmem:[#allocation2 + $0x6f] sm:$0xfe] %vm957, %v890
        %974 = vst.msk [vmem:[#allocation2 + $0x77] sm:$0xff] %vm959, %v892
        %975 = vst.msk [vmem:[#allocation2 + $0x7f] sm:$0xfe] %vm957, %v894
        %976 = vst.msk [vmem:[#allocation2 + $0x87] sm:$0xff] %vm959, %v896
        %977 = vst.msk [vmem:[#allocation2 + $0x8f] sm:$0xfe] %vm957, %v898
        %978 = vst.msk [vmem:[#allocation2 + $0x97] sm:$0xff] %vm959, %v900
        %979 = vst.msk [vmem:[#allocation2 + $0x9f] sm:$0xfe] %vm957, %v902
        %980 = vst.msk [vmem:[#allocation2 + $0xa7] sm:$0xff] %vm959, %v904
        %981 = vst.msk [vmem:[#allocation2 + $0xaf] sm:$0xfe] %vm957, %v906
        %982 = vst.msk [vmem:[#allocation2 + $0xb7] sm:$0xff] %vm959, %v908
        %983 = vst.msk [vmem:[#allocation2 + $0xbf] sm:$0xfe] %vm957, %v910
        %984 = vst.msk [vmem:[#allocation2 + $0xc7] sm:$0xff] %vm959, %v912
        %985 = vst.msk [vmem:[#allocation2 + $0xcf] sm:$0xfe] %vm957, %v914
        %986 = vst.msk [vmem:[#allocation2 + $0xd7] sm:$0xff] %vm959, %v916
        %987 = vst.msk [vmem:[#allocation2 + $0xdf] sm:$0xfe] %vm957, %v918
        %988 = vst.msk [vmem:[#allocation2 + $0xe7] sm:$0xff] %vm959, %v920
        %989 = vst.msk [vmem:[#allocation2 + $0xef] sm:$0xfe] %vm957, %v922
        %990 = vst.msk [vmem:[#allocation2 + $0xf7] sm:$0xff] %vm959, %v924
        %991 = vrot.lane.b32.xlu0 %v224, 24
        %v992 = vpop.permute.xlu0 %991
        %993 = vrot.lane.b32.xlu0 %v225, 24
        %v994 = vpop.permute.xlu0 %993
        %995 = vrot.lane.b32.xlu0 %v226, 24
        %v996 = vpop.permute.xlu0 %995
        %997 = vrot.lane.b32.xlu0 %v227, 24
        %v998 = vpop.permute.xlu0 %997
        %999 = vrot.lane.b32.xlu0 %v228, 24
        %v1000 = vpop.permute.xlu0 %999
        %1001 = vrot.lane.b32.xlu0 %v229, 24
        %v1002 = vpop.permute.xlu0 %1001
        %1003 = vrot.lane.b32.xlu0 %v230, 24
        %v1004 = vpop.permute.xlu0 %1003
        %1005 = vrot.lane.b32.xlu0 %v231, 24
        %v1006 = vpop.permute.xlu0 %1005
        %1007 = vrot.lane.b32.xlu0 %v232, 24
        %v1008 = vpop.permute.xlu0 %1007
        %1009 = vrot.lane.b32.xlu0 %v233, 24
        %v1010 = vpop.permute.xlu0 %1009
        %1011 = vrot.lane.b32.xlu0 %v234, 24
        %v1012 = vpop.permute.xlu0 %1011
        %1013 = vrot.lane.b32.xlu0 %v235, 24
        %v1014 = vpop.permute.xlu0 %1013
        %1015 = vrot.lane.b32.xlu0 %v236, 24
        %v1016 = vpop.permute.xlu0 %1015
        %1017 = vrot.lane.b32.xlu0 %v237, 24
        %v1018 = vpop.permute.xlu0 %1017
        %1019 = vrot.lane.b32.xlu0 %v238, 24
        %v1020 = vpop.permute.xlu0 %1019
        %1021 = vrot.lane.b32.xlu0 %v239, 24
        %v1022 = vpop.permute.xlu0 %1021
        %1023 = vrot.lane.b32.xlu0 %v240, 24
        %v1024 = vpop.permute.xlu0 %1023
        %1025 = vrot.lane.b32.xlu0 %v241, 24
        %v1026 = vpop.permute.xlu0 %1025
        %1027 = vrot.lane.b32.xlu0 %v242, 24
        %v1028 = vpop.permute.xlu0 %1027
        %1029 = vrot.lane.b32.xlu0 %v243, 24
        %v1030 = vpop.permute.xlu0 %1029
        %1031 = vrot.lane.b32.xlu0 %v244, 24
        %v1032 = vpop.permute.xlu0 %1031
        %1033 = vrot.lane.b32.xlu0 %v245, 24
        %v1034 = vpop.permute.xlu0 %1033
        %1035 = vrot.lane.b32.xlu0 %v246, 24
        %v1036 = vpop.permute.xlu0 %1035
        %1037 = vrot.lane.b32.xlu0 %v247, 24
        %v1038 = vpop.permute.xlu0 %1037
        %1039 = vrot.lane.b32.xlu0 %v248, 24
        %v1040 = vpop.permute.xlu0 %1039
        %1041 = vrot.lane.b32.xlu0 %v249, 24
        %v1042 = vpop.permute.xlu0 %1041
        %1043 = vrot.lane.b32.xlu0 %v250, 24
        %v1044 = vpop.permute.xlu0 %1043
        %1045 = vrot.lane.b32.xlu0 %v251, 24
        %v1046 = vpop.permute.xlu0 %1045
        %1047 = vrot.lane.b32.xlu0 %v252, 24
        %v1048 = vpop.permute.xlu0 %1047
        %1049 = vrot.lane.b32.xlu0 %v253, 24
        %v1050 = vpop.permute.xlu0 %1049
        %vm1081 = vcmask 228544
        %1082 = vst.msk [vmem:[#allocation2 + $0x1] sm:$0xff] %vm1081, %v992
        %vm1083 = vcmask 227520
        %1084 = vst.msk [vmem:[#allocation2 + $0x9] sm:$0x7f] %vm1083, %v994
        %1085 = vst.msk [vmem:[#allocation2 + $0x11] sm:$0xff] %vm1081, %v996
        %1086 = vst.msk [vmem:[#allocation2 + $0x19] sm:$0x7f] %vm1083, %v998
        %1087 = vst.msk [vmem:[#allocation2 + $0x21] sm:$0xff] %vm1081, %v1000
        %1088 = vst.msk [vmem:[#allocation2 + $0x29] sm:$0x7f] %vm1083, %v1002
        %1089 = vst.msk [vmem:[#allocation2 + $0x31] sm:$0xff] %vm1081, %v1004
        %1090 = vst.msk [vmem:[#allocation2 + $0x39] sm:$0x7f] %vm1083, %v1006
        %1091 = vst.msk [vmem:[#allocation2 + $0x41] sm:$0xff] %vm1081, %v1008
        %1092 = vst.msk [vmem:[#allocation2 + $0x49] sm:$0x7f] %vm1083, %v1010
        %1093 = vst.msk [vmem:[#allocation2 + $0x51] sm:$0xff] %vm1081, %v1012
        %1094 = vst.msk [vmem:[#allocation2 + $0x59] sm:$0x7f] %vm1083, %v1014
        %1095 = vst.msk [vmem:[#allocation2 + $0x61] sm:$0xff] %vm1081, %v1016
        %1096 = vst.msk [vmem:[#allocation2 + $0x69] sm:$0x7f] %vm1083, %v1018
        %1097 = vst.msk [vmem:[#allocation2 + $0x71] sm:$0xff] %vm1081, %v1020
        %1098 = vst.msk [vmem:[#allocation2 + $0x79] sm:$0x7f] %vm1083, %v1022
        %1099 = vst.msk [vmem:[#allocation2 + $0x81] sm:$0xff] %vm1081, %v1024
        %1100 = vst.msk [vmem:[#allocation2 + $0x89] sm:$0x7f] %vm1083, %v1026
        %1101 = vst.msk [vmem:[#allocation2 + $0x91] sm:$0xff] %vm1081, %v1028
        %1102 = vst.msk [vmem:[#allocation2 + $0x99] sm:$0x7f] %vm1083, %v1030
        %1103 = vst.msk [vmem:[#allocation2 + $0xa1] sm:$0xff] %vm1081, %v1032
        %1104 = vst.msk [vmem:[#allocation2 + $0xa9] sm:$0x7f] %vm1083, %v1034
        %1105 = vst.msk [vmem:[#allocation2 + $0xb1] sm:$0xff] %vm1081, %v1036
        %1106 = vst.msk [vmem:[#allocation2 + $0xb9] sm:$0x7f] %vm1083, %v1038
        %1107 = vst.msk [vmem:[#allocation2 + $0xc1] sm:$0xff] %vm1081, %v1040
        %1108 = vst.msk [vmem:[#allocation2 + $0xc9] sm:$0x7f] %vm1083, %v1042
        %1109 = vst.msk [vmem:[#allocation2 + $0xd1] sm:$0xff] %vm1081, %v1044
        %1110 = vst.msk [vmem:[#allocation2 + $0xd9] sm:$0x7f] %vm1083, %v1046
        %1111 = vst.msk [vmem:[#allocation2 + $0xe1] sm:$0xff] %vm1081, %v1048
        %1112 = vst.msk [vmem:[#allocation2 + $0xe9] sm:$0x7f] %vm1083, %v1050
        %1113 = vrot.lane.b32.xlu0 %v224, 28
        %v1114 = vpop.permute.xlu0 %1113
        %1115 = vrot.lane.b32.xlu0 %v225, 28
        %v1116 = vpop.permute.xlu0 %1115
        %1117 = vrot.lane.b32.xlu0 %v226, 28
        %v1118 = vpop.permute.xlu0 %1117
        %1119 = vrot.lane.b32.xlu0 %v227, 28
        %v1120 = vpop.permute.xlu0 %1119
        %1121 = vrot.lane.b32.xlu0 %v228, 28
        %v1122 = vpop.permute.xlu0 %1121
        %1123 = vrot.lane.b32.xlu0 %v229, 28
        %v1124 = vpop.permute.xlu0 %1123
        %1125 = vrot.lane.b32.xlu0 %v230, 28
        %v1126 = vpop.permute.xlu0 %1125
        %1127 = vrot.lane.b32.xlu0 %v231, 28
        %v1128 = vpop.permute.xlu0 %1127
        %1129 = vrot.lane.b32.xlu0 %v232, 28
        %v1130 = vpop.permute.xlu0 %1129
        %1131 = vrot.lane.b32.xlu0 %v233, 28
        %v1132 = vpop.permute.xlu0 %1131
        %1133 = vrot.lane.b32.xlu0 %v234, 28
        %v1134 = vpop.permute.xlu0 %1133
        %1135 = vrot.lane.b32.xlu0 %v235, 28
        %v1136 = vpop.permute.xlu0 %1135
        %1137 = vrot.lane.b32.xlu0 %v236, 28
        %v1138 = vpop.permute.xlu0 %1137
        %1139 = vrot.lane.b32.xlu0 %v237, 28
        %v1140 = vpop.permute.xlu0 %1139
        %1141 = vrot.lane.b32.xlu0 %v238, 28
        %v1142 = vpop.permute.xlu0 %1141
        %1143 = vrot.lane.b32.xlu0 %v239, 28
        %v1144 = vpop.permute.xlu0 %1143
        %1145 = vrot.lane.b32.xlu0 %v240, 28
        %v1146 = vpop.permute.xlu0 %1145
        %1147 = vrot.lane.b32.xlu0 %v241, 28
        %v1148 = vpop.permute.xlu0 %1147
        %1149 = vrot.lane.b32.xlu0 %v242, 28
        %v1150 = vpop.permute.xlu0 %1149
        %1151 = vrot.lane.b32.xlu0 %v243, 28
        %v1152 = vpop.permute.xlu0 %1151
        %1153 = vrot.lane.b32.xlu0 %v244, 28
        %v1154 = vpop.permute.xlu0 %1153
        %1155 = vrot.lane.b32.xlu0 %v245, 28
        %v1156 = vpop.permute.xlu0 %1155
        %1157 = vrot.lane.b32.xlu0 %v246, 28
        %v1158 = vpop.permute.xlu0 %1157
        %1159 = vrot.lane.b32.xlu0 %v247, 28
        %v1160 = vpop.permute.xlu0 %1159
        %1161 = vrot.lane.b32.xlu0 %v248, 28
        %v1162 = vpop.permute.xlu0 %1161
        %1163 = vrot.lane.b32.xlu0 %v249, 28
        %v1164 = vpop.permute.xlu0 %1163
        %1165 = vrot.lane.b32.xlu0 %v250, 28
        %v1166 = vpop.permute.xlu0 %1165
        %1167 = vrot.lane.b32.xlu0 %v251, 28
        %v1168 = vpop.permute.xlu0 %1167
        %1169 = vrot.lane.b32.xlu0 %v252, 28
        %v1170 = vpop.permute.xlu0 %1169
        %1171 = vrot.lane.b32.xlu0 %v253, 28
        %v1172 = vpop.permute.xlu0 %1171
        %vm1203 = vcmask 261344
        %1204 = vst.msk [vmem:[#allocation2] sm:$0xff] %vm1203, %v1114
        %1205 = vst.msk [vmem:[#allocation2 + $0x8] sm:$0xff] %vm1203, %v1116
        %1206 = vst.msk [vmem:[#allocation2 + $0x10] sm:$0xff] %vm1203, %v1118
        %1207 = vst.msk [vmem:[#allocation2 + $0x18] sm:$0xff] %vm1203, %v1120
        %1208 = vst.msk [vmem:[#allocation2 + $0x20] sm:$0xff] %vm1203, %v1122
        %1209 = vst.msk [vmem:[#allocation2 + $0x28] sm:$0xff] %vm1203, %v1124
        %1210 = vst.msk [vmem:[#allocation2 + $0x30] sm:$0xff] %vm1203, %v1126
        %1211 = vst.msk [vmem:[#allocation2 + $0x38] sm:$0xff] %vm1203, %v1128
        %1212 = vst.msk [vmem:[#allocation2 + $0x40] sm:$0xff] %vm1203, %v1130
        %1213 = vst.msk [vmem:[#allocation2 + $0x48] sm:$0xff] %vm1203, %v1132
        %1214 = vst.msk [vmem:[#allocation2 + $0x50] sm:$0xff] %vm1203, %v1134
        %1215 = vst.msk [vmem:[#allocation2 + $0x58] sm:$0xff] %vm1203, %v1136
        %1216 = vst.msk [vmem:[#allocation2 + $0x60] sm:$0xff] %vm1203, %v1138
        %1217 = vst.msk [vmem:[#allocation2 + $0x68] sm:$0xff] %vm1203, %v1140
        %1218 = vst.msk [vmem:[#allocation2 + $0x70] sm:$0xff] %vm1203, %v1142
        %1219 = vst.msk [vmem:[#allocation2 + $0x78] sm:$0xff] %vm1203, %v1144
        %1220 = vst.msk [vmem:[#allocation2 + $0x80] sm:$0xff] %vm1203, %v1146
        %1221 = vst.msk [vmem:[#allocation2 + $0x88] sm:$0xff] %vm1203, %v1148
        %1222 = vst.msk [vmem:[#allocation2 + $0x90] sm:$0xff] %vm1203, %v1150
        %1223 = vst.msk [vmem:[#allocation2 + $0x98] sm:$0xff] %vm1203, %v1152
        %1224 = vst.msk [vmem:[#allocation2 + $0xa0] sm:$0xff] %vm1203, %v1154
        %1225 = vst.msk [vmem:[#allocation2 + $0xa8] sm:$0xff] %vm1203, %v1156
        %1226 = vst.msk [vmem:[#allocation2 + $0xb0] sm:$0xff] %vm1203, %v1158
        %1227 = vst.msk [vmem:[#allocation2 + $0xb8] sm:$0xff] %vm1203, %v1160
        %1228 = vst.msk [vmem:[#allocation2 + $0xc0] sm:$0xff] %vm1203, %v1162
        %1229 = vst.msk [vmem:[#allocation2 + $0xc8] sm:$0xff] %vm1203, %v1164
        %1230 = vst.msk [vmem:[#allocation2 + $0xd0] sm:$0xff] %vm1203, %v1166
        %1231 = vst.msk [vmem:[#allocation2 + $0xd8] sm:$0xff] %vm1203, %v1168
        %1232 = vst.msk [vmem:[#allocation2 + $0xe0] sm:$0xff] %vm1203, %v1170
        %1233 = vst.msk [vmem:[#allocation2 + $0xe8] sm:$0xff] %vm1203, %v1172
        %1234 = vrot.lane.b32.xlu0 %v224, 32
        %v1235 = vpop.permute.xlu0 %1234
        %1236 = vrot.lane.b32.xlu0 %v225, 32
        %v1237 = vpop.permute.xlu0 %1236
        %1238 = vrot.lane.b32.xlu0 %v226, 32
        %v1239 = vpop.permute.xlu0 %1238
        %1240 = vrot.lane.b32.xlu0 %v227, 32
        %v1241 = vpop.permute.xlu0 %1240
        %1242 = vrot.lane.b32.xlu0 %v228, 32
        %v1243 = vpop.permute.xlu0 %1242
        %1244 = vrot.lane.b32.xlu0 %v229, 32
        %v1245 = vpop.permute.xlu0 %1244
        %1246 = vrot.lane.b32.xlu0 %v230, 32
        %v1247 = vpop.permute.xlu0 %1246
        %1248 = vrot.lane.b32.xlu0 %v231, 32
        %v1249 = vpop.permute.xlu0 %1248
        %1250 = vrot.lane.b32.xlu0 %v232, 32
        %v1251 = vpop.permute.xlu0 %1250
        %1252 = vrot.lane.b32.xlu0 %v233, 32
        %v1253 = vpop.permute.xlu0 %1252
        %1254 = vrot.lane.b32.xlu0 %v234, 32
        %v1255 = vpop.permute.xlu0 %1254
        %1256 = vrot.lane.b32.xlu0 %v235, 32
        %v1257 = vpop.permute.xlu0 %1256
        %1258 = vrot.lane.b32.xlu0 %v236, 32
        %v1259 = vpop.permute.xlu0 %1258
        %1260 = vrot.lane.b32.xlu0 %v237, 32
        %v1261 = vpop.permute.xlu0 %1260
        %1262 = vrot.lane.b32.xlu0 %v238, 32
        %v1263 = vpop.permute.xlu0 %1262
        %1264 = vrot.lane.b32.xlu0 %v239, 32
        %v1265 = vpop.permute.xlu0 %1264
        %1266 = vrot.lane.b32.xlu0 %v240, 32
        %v1267 = vpop.permute.xlu0 %1266
        %1268 = vrot.lane.b32.xlu0 %v241, 32
        %v1269 = vpop.permute.xlu0 %1268
        %1270 = vrot.lane.b32.xlu0 %v242, 32
        %v1271 = vpop.permute.xlu0 %1270
        %1272 = vrot.lane.b32.xlu0 %v243, 32
        %v1273 = vpop.permute.xlu0 %1272
        %1274 = vrot.lane.b32.xlu0 %v244, 32
        %v1275 = vpop.permute.xlu0 %1274
        %1276 = vrot.lane.b32.xlu0 %v245, 32
        %v1277 = vpop.permute.xlu0 %1276
        %1278 = vrot.lane.b32.xlu0 %v246, 32
        %v1279 = vpop.permute.xlu0 %1278
        %1280 = vrot.lane.b32.xlu0 %v247, 32
        %v1281 = vpop.permute.xlu0 %1280
        %1282 = vrot.lane.b32.xlu0 %v248, 32
        %v1283 = vpop.permute.xlu0 %1282
        %1284 = vrot.lane.b32.xlu0 %v249, 32
        %v1285 = vpop.permute.xlu0 %1284
        %1286 = vrot.lane.b32.xlu0 %v250, 32
        %v1287 = vpop.permute.xlu0 %1286
        %1288 = vrot.lane.b32.xlu0 %v251, 32
        %v1289 = vpop.permute.xlu0 %1288
        %1290 = vrot.lane.b32.xlu0 %v252, 32
        %v1291 = vpop.permute.xlu0 %1290
        %1292 = vrot.lane.b32.xlu0 %v253, 32
        %v1293 = vpop.permute.xlu0 %1292
        %vm1324 = vcmask 294145
        %1325 = vst.msk [vmem:[#allocation2 - $0x1] sm:$0xfe] %vm1324, %v1235
        %vm1326 = vcmask 294144
        %1327 = vst.msk [vmem:[#allocation2 + $0x7] sm:$0xff] %vm1326, %v1237
        %1328 = vst.msk [vmem:[#allocation2 + $0xf] sm:$0xfe] %vm1324, %v1239
        %1329 = vst.msk [vmem:[#allocation2 + $0x17] sm:$0xff] %vm1326, %v1241
        %1330 = vst.msk [vmem:[#allocation2 + $0x1f] sm:$0xfe] %vm1324, %v1243
        %1331 = vst.msk [vmem:[#allocation2 + $0x27] sm:$0xff] %vm1326, %v1245
        %1332 = vst.msk [vmem:[#allocation2 + $0x2f] sm:$0xfe] %vm1324, %v1247
        %1333 = vst.msk [vmem:[#allocation2 + $0x37] sm:$0xff] %vm1326, %v1249
        %1334 = vst.msk [vmem:[#allocation2 + $0x3f] sm:$0xfe] %vm1324, %v1251
        %1335 = vst.msk [vmem:[#allocation2 + $0x47] sm:$0xff] %vm1326, %v1253
        %1336 = vst.msk [vmem:[#allocation2 + $0x4f] sm:$0xfe] %vm1324, %v1255
        %1337 = vst.msk [vmem:[#allocation2 + $0x57] sm:$0xff] %vm1326, %v1257
        %1338 = vst.msk [vmem:[#allocation2 + $0x5f] sm:$0xfe] %vm1324, %v1259
        %1339 = vst.msk [vmem:[#allocation2 + $0x67] sm:$0xff] %vm1326, %v1261
        %1340 = vst.msk [vmem:[#allocation2 + $0x6f] sm:$0xfe] %vm1324, %v1263
        %1341 = vst.msk [vmem:[#allocation2 + $0x77] sm:$0xff] %vm1326, %v1265
        %1342 = vst.msk [vmem:[#allocation2 + $0x7f] sm:$0xfe] %vm1324, %v1267
        %1343 = vst.msk [vmem:[#allocation2 + $0x87] sm:$0xff] %vm1326, %v1269
        %1344 = vst.msk [vmem:[#allocation2 + $0x8f] sm:$0xfe] %vm1324, %v1271
        %1345 = vst.msk [vmem:[#allocation2 + $0x97] sm:$0xff] %vm1326, %v1273
        %1346 = vst.msk [vmem:[#allocation2 + $0x9f] sm:$0xfe] %vm1324, %v1275
        %1347 = vst.msk [vmem:[#allocation2 + $0xa7] sm:$0xff] %vm1326, %v1277
        %1348 = vst.msk [vmem:[#allocation2 + $0xaf] sm:$0xfe] %vm1324, %v1279
        %1349 = vst.msk [vmem:[#allocation2 + $0xb7] sm:$0xff] %vm1326, %v1281
        %1350 = vst.msk [vmem:[#allocation2 + $0xbf] sm:$0xfe] %vm1324, %v1283
        %1351 = vst.msk [vmem:[#allocation2 + $0xc7] sm:$0xff] %vm1326, %v1285
        %1352 = vst.msk [vmem:[#allocation2 + $0xcf] sm:$0xfe] %vm1324, %v1287
        %1353 = vst.msk [vmem:[#allocation2 + $0xd7] sm:$0xff] %vm1326, %v1289
        %1354 = vst.msk [vmem:[#allocation2 + $0xdf] sm:$0xfe] %vm1324, %v1291
        %1355 = vst.msk [vmem:[#allocation2 + $0xe7] sm:$0xff] %vm1326, %v1293
        %v1356 = vld [vmem:[#allocation2] sm:$0xff]
        %v1357 = vld [vmem:[#allocation2 + $0x8] sm:$0xff]
        %v1358 = vld [vmem:[#allocation2 + $0x10] sm:$0xff]
        %v1359 = vld [vmem:[#allocation2 + $0x18] sm:$0xff]
        %v1360 = vld [vmem:[#allocation2 + $0x20] sm:$0xff]
        %v1361 = vld [vmem:[#allocation2 + $0x28] sm:$0xff]
        %v1362 = vld [vmem:[#allocation2 + $0x30] sm:$0xff]
        %v1363 = vld [vmem:[#allocation2 + $0x38] sm:$0xff]
        %v1364 = vld [vmem:[#allocation2 + $0x40] sm:$0xff]
        %v1365 = vld [vmem:[#allocation2 + $0x48] sm:$0xff]
        %v1366 = vld [vmem:[#allocation2 + $0x50] sm:$0xff]
        %v1367 = vld [vmem:[#allocation2 + $0x58] sm:$0xff]
        %v1368 = vld [vmem:[#allocation2 + $0x60] sm:$0xff]
        %v1369 = vld [vmem:[#allocation2 + $0x68] sm:$0xff]
        %v1370 = vld [vmem:[#allocation2 + $0x70] sm:$0xff]
        %v1371 = vld [vmem:[#allocation2 + $0x78] sm:$0xff]
        %v1372 = vld [vmem:[#allocation2 + $0x80] sm:$0xff]
        %v1373 = vld [vmem:[#allocation2 + $0x88] sm:$0xff]
        %v1374 = vld [vmem:[#allocation2 + $0x90] sm:$0xff]
        %v1375 = vld [vmem:[#allocation2 + $0x98] sm:$0xff]
        %v1376 = vld [vmem:[#allocation2 + $0xa0] sm:$0xff]
        %v1377 = vld [vmem:[#allocation2 + $0xa8] sm:$0xff]
        %v1378 = vld [vmem:[#allocation2 + $0xb0] sm:$0xff]
        %v1379 = vld [vmem:[#allocation2 + $0xb8] sm:$0xff]
        %v1380 = vld [vmem:[#allocation2 + $0xc0] sm:$0xff]
        %v1381 = vld [vmem:[#allocation2 + $0xc8] sm:$0xff]
        %v1382 = vld [vmem:[#allocation2 + $0xd0] sm:$0xff]
        %v1383 = vld [vmem:[#allocation2 + $0xd8] sm:$0xff]
        %v1384 = vld [vmem:[#allocation2 + $0xe0] sm:$0xff]
        %v1385 = vld [vmem:[#allocation2 + $0xe8] sm:$0xff]
        %v1386 = vld [vmem:[#allocation2 + $0xf0] sm:$0xff]
        %v1387 = vld [vmem:[#allocation2 + $0xf8] sm:$0xff]
        %v1388 = vld [vmem:[%s1] sm:$0xff]
        %v1389 = vld [vmem:[%s1 + $0x8] sm:$0xff]
        %v1390 = vld [vmem:[%s1 + $0x10] sm:$0xff]
        %v1391 = vld [vmem:[%s1 + $0x18] sm:$0xff]
        %v1392 = vld [vmem:[%s1 + $0x20] sm:$0xf]
        %v1393 = vld [vmem:[%s2] sm:$0x1]
        %v1395 = vlaneseq
        %v1396 = vshrl.u32 %v1395, 7
        %v1397 = vsub.s32 0, %v1396
        %v1398 = vrot.slane %v1393, %v1397
        %v1401 = vsel %vm261, %v1356, 0
        %v1404 = vsel %vm261, %v1357, 0
        %v1407 = vsel %vm261, %v1358, 0
        %v1410 = vsel %vm261, %v1359, 0
        %v1413 = vsel %vm261, %v1360, 0
        %v1416 = vsel %vm261, %v1361, 0
        %v1419 = vsel %vm261, %v1362, 0
        %v1422 = vsel %vm261, %v1363, 0
        %v1425 = vsel %vm261, %v1364, 0
        %v1428 = vsel %vm261, %v1365, 0
        %v1431 = vsel %vm261, %v1366, 0
        %v1434 = vsel %vm261, %v1367, 0
        %v1437 = vsel %vm261, %v1368, 0
        %v1440 = vsel %vm261, %v1369, 0
        %v1443 = vsel %vm261, %v1370, 0
        %v1446 = vsel %vm261, %v1371, 0
        %v1449 = vsel %vm261, %v1372, 0
        %v1452 = vsel %vm261, %v1373, 0
        %v1455 = vsel %vm261, %v1374, 0
        %v1458 = vsel %vm261, %v1375, 0
        %v1461 = vsel %vm261, %v1376, 0
        %v1464 = vsel %vm261, %v1377, 0
        %v1467 = vsel %vm261, %v1378, 0
        %v1470 = vsel %vm261, %v1379, 0
        %v1473 = vsel %vm261, %v1380, 0
        %v1476 = vsel %vm261, %v1381, 0
        %v1479 = vsel %vm261, %v1382, 0
        %v1482 = vsel %vm261, %v1383, 0
        %v1485 = vsel %vm261, %v1384, 0
        %v1488 = vsel %vm261, %v1385, 0
        %v1491 = vsel %vm261, %v1386, 0
        %v1494 = vsel %vm261, %v1387, 0
        %vm1496 = vcmask 1043456
        %v1498 = vsel %vm1496, %v1392, 0
        %1500 = vmatprep.subr.mxu0 0.0
        %1501 = vmatpush1.msra.mxu0 0.0
        %1502 = vmatprep.subr.mxu0 0.0
        %1503 = vmatpush1.msra.mxu0 0.0
        %1504 = vmatprep.subr.mxu0 0.0
        %1505 = vmatpush1.msra.mxu0 0.0
        %1506 = vmatprep.subr.mxu0 0.0
        %1507 = vmatpush1.msra.mxu0 0.0
        %1508 = vmatprep.subr.mxu0 0.0
        %1509 = vmatpush1.msra.mxu0 0.0
        %1510 = vmatprep.subr.mxu0 0.0
        %1511 = vmatpush1.msra.mxu0 0.0
        %1512 = vmatprep.subr.mxu0 0.0
        %1513 = vmatpush1.msra.mxu0 0.0
        %1514 = vmatprep.subr.mxu0 0.0
        %1515 = vmatpush1.msra.mxu0 0.0
        %1516 = vmatprep.subr.mxu0 0.0
        %1517 = vmatpush1.msra.mxu0 0.0
        %1518 = vmatprep.subr.mxu0 0.0
        %1519 = vmatpush1.msra.mxu0 0.0
        %1520 = vmatprep.subr.mxu0 0.0
        %1521 = vmatpush1.msra.mxu0 0.0
        %1522 = vmatprep.subr.mxu0 0.0
        %1523 = vmatpush1.msra.mxu0 %v1498
        %1524 = vmatprep.subr.mxu0 0.0
        %1525 = vmatpush1.msra.mxu0 %v1391
        %1526 = vmatprep.subr.mxu0 0.0
        %1527 = vmatpush1.msra.mxu0 %v1390
        %1528 = vmatprep.subr.mxu0 0.0
        %1529 = vmatpush1.msra.mxu0 %v1389
        %1530 = vmatprep.subr.mxu0 0.0
        %1531 = vmatpush1.msra.mxu0 %v1388
        %1532 = vmatprep.subr.mxu0 0.0
        %1533 = vmatpush2.msra.mxu0 0.0
        %1534 = vmatprep.subr.mxu0 0.0
        %1535 = vmatpush2.msra.mxu0 0.0
        %1536 = vmatprep.subr.mxu0 0.0
        %1537 = vmatpush2.msra.mxu0 0.0
        %1538 = vmatprep.subr.mxu0 0.0
        %1539 = vmatpush2.msra.mxu0 0.0
        %1540 = vmatprep.subr.mxu0 0.0
        %1541 = vmatpush2.msra.mxu0 0.0
        %1542 = vmatprep.subr.mxu0 0.0
        %1543 = vmatpush2.msra.mxu0 0.0
        %1544 = vmatprep.subr.mxu0 0.0
        %1545 = vmatpush2.msra.mxu0 0.0
        %1546 = vmatprep.subr.mxu0 0.0
        %1547 = vmatpush2.msra.mxu0 0.0
        %1548 = vmatprep.subr.mxu0 0.0
        %1549 = vmatpush2.msra.mxu0 0.0
        %1550 = vmatprep.subr.mxu0 0.0
        %1551 = vmatpush2.msra.mxu0 0.0
        %1552 = vmatprep.subr.mxu0 0.0
        %1553 = vmatpush2.msra.mxu0 0.0
        %1554 = vmatprep.subr.mxu0 0.0
        %1555 = vmatpush2.msra.mxu0 0.0
        %1556 = vmatprep.subr.mxu0 0.0
        %1557 = vmatpush2.msra.mxu0 0.0
        %1558 = vmatprep.subr.mxu0 0.0
        %1559 = vmatpush2.msra.mxu0 0.0
        %1560 = vmatprep.subr.mxu0 0.0
        %1561 = vmatpush2.msra.mxu0 0.0
        %1562 = vmatprep.subr.mxu0 0.0
        %1563 = vmatpush2.msra.mxu0 0.0
        %1564 = vmatprep.mubr.f32.mxu0 0.0
        %1565 = vmatmul.mubr.f32.gmra.mxu0 %v1401
        %v1566 = vpop.f32.mrf.mxu0
        %v1567 = vadd.f32 %v1398, %v1566
        %v1568 = vpop.f32.mrf.mxu0
        %1569 = vmatprep.mubr.f32.mxu0 0.0
        %1570 = vmatmul.mubr.f32.gmra.mxu0 %v1404
        %v1571 = vpop.f32.mrf.mxu0
        %v1572 = vadd.f32 %v1398, %v1571
        %v1573 = vpop.f32.mrf.mxu0
        %1574 = vmatprep.mubr.f32.mxu0 0.0
        %1575 = vmatmul.mubr.f32.gmra.mxu0 %v1407
        %v1576 = vpop.f32.mrf.mxu0
        %v1577 = vadd.f32 %v1398, %v1576
        %v1578 = vpop.f32.mrf.mxu0
        %1579 = vmatprep.mubr.f32.mxu0 0.0
        %1580 = vmatmul.mubr.f32.gmra.mxu0 %v1410
        %v1581 = vpop.f32.mrf.mxu0
        %v1582 = vadd.f32 %v1398, %v1581
        %v1583 = vpop.f32.mrf.mxu0
        %1584 = vmatprep.mubr.f32.mxu0 0.0
        %1585 = vmatmul.mubr.f32.gmra.mxu0 %v1413
        %v1586 = vpop.f32.mrf.mxu0
        %v1587 = vadd.f32 %v1398, %v1586
        %v1588 = vpop.f32.mrf.mxu0
        %1589 = vmatprep.mubr.f32.mxu0 0.0
        %1590 = vmatmul.mubr.f32.gmra.mxu0 %v1416
        %v1591 = vpop.f32.mrf.mxu0
        %v1592 = vadd.f32 %v1398, %v1591
        %v1593 = vpop.f32.mrf.mxu0
        %1594 = vmatprep.mubr.f32.mxu0 0.0
        %1595 = vmatmul.mubr.f32.gmra.mxu0 %v1419
        %v1596 = vpop.f32.mrf.mxu0
        %v1597 = vadd.f32 %v1398, %v1596
        %v1598 = vpop.f32.mrf.mxu0
        %1599 = vmatprep.mubr.f32.mxu0 0.0
        %1600 = vmatmul.mubr.f32.gmra.mxu0 %v1422
        %v1601 = vpop.f32.mrf.mxu0
        %v1602 = vadd.f32 %v1398, %v1601
        %v1603 = vpop.f32.mrf.mxu0
        %1604 = vmatprep.mubr.f32.mxu0 0.0
        %1605 = vmatmul.mubr.f32.gmra.mxu0 %v1425
        %v1606 = vpop.f32.mrf.mxu0
        %v1607 = vadd.f32 %v1398, %v1606
        %v1608 = vpop.f32.mrf.mxu0
        %1609 = vmatprep.mubr.f32.mxu0 0.0
        %1610 = vmatmul.mubr.f32.gmra.mxu0 %v1428
        %v1611 = vpop.f32.mrf.mxu0
        %v1612 = vadd.f32 %v1398, %v1611
        %v1613 = vpop.f32.mrf.mxu0
        %1614 = vmatprep.mubr.f32.mxu0 0.0
        %1615 = vmatmul.mubr.f32.gmra.mxu0 %v1431
        %v1616 = vpop.f32.mrf.mxu0
        %v1617 = vadd.f32 %v1398, %v1616
        %v1618 = vpop.f32.mrf.mxu0
        %1619 = vmatprep.mubr.f32.mxu0 0.0
        %1620 = vmatmul.mubr.f32.gmra.mxu0 %v1434
        %v1621 = vpop.f32.mrf.mxu0
        %v1622 = vadd.f32 %v1398, %v1621
        %v1623 = vpop.f32.mrf.mxu0
        %1624 = vmatprep.mubr.f32.mxu0 0.0
        %1625 = vmatmul.mubr.f32.gmra.mxu0 %v1437
        %v1626 = vpop.f32.mrf.mxu0
        %v1627 = vadd.f32 %v1398, %v1626
        %v1628 = vpop.f32.mrf.mxu0
        %1629 = vmatprep.mubr.f32.mxu0 0.0
        %1630 = vmatmul.mubr.f32.gmra.mxu0 %v1440
        %v1631 = vpop.f32.mrf.mxu0
        %v1632 = vadd.f32 %v1398, %v1631
        %v1633 = vpop.f32.mrf.mxu0
        %1634 = vmatprep.mubr.f32.mxu0 0.0
        %1635 = vmatmul.mubr.f32.gmra.mxu0 %v1443
        %v1636 = vpop.f32.mrf.mxu0
        %v1637 = vadd.f32 %v1398, %v1636
        %v1638 = vpop.f32.mrf.mxu0
        %1639 = vmatprep.mubr.f32.mxu0 0.0
        %1640 = vmatmul.mubr.f32.gmra.mxu0 %v1446
        %v1641 = vpop.f32.mrf.mxu0
        %v1642 = vadd.f32 %v1398, %v1641
        %v1643 = vpop.f32.mrf.mxu0
        %1644 = vmatprep.mubr.f32.mxu0 0.0
        %1645 = vmatmul.mubr.f32.gmra.mxu0 %v1449
        %v1646 = vpop.f32.mrf.mxu0
        %v1647 = vadd.f32 %v1398, %v1646
        %v1648 = vpop.f32.mrf.mxu0
        %1649 = vmatprep.mubr.f32.mxu0 0.0
        %1650 = vmatmul.mubr.f32.gmra.mxu0 %v1452
        %v1651 = vpop.f32.mrf.mxu0
        %v1652 = vadd.f32 %v1398, %v1651
        %v1653 = vpop.f32.mrf.mxu0
        %1654 = vmatprep.mubr.f32.mxu0 0.0
        %1655 = vmatmul.mubr.f32.gmra.mxu0 %v1455
        %v1656 = vpop.f32.mrf.mxu0
        %v1657 = vadd.f32 %v1398, %v1656
        %v1658 = vpop.f32.mrf.mxu0
        %1659 = vmatprep.mubr.f32.mxu0 0.0
        %1660 = vmatmul.mubr.f32.gmra.mxu0 %v1458
        %v1661 = vpop.f32.mrf.mxu0
        %v1662 = vadd.f32 %v1398, %v1661
        %v1663 = vpop.f32.mrf.mxu0
        %1664 = vmatprep.mubr.f32.mxu0 0.0
        %1665 = vmatmul.mubr.f32.gmra.mxu0 %v1461
        %v1666 = vpop.f32.mrf.mxu0
        %v1667 = vadd.f32 %v1398, %v1666
        %v1668 = vpop.f32.mrf.mxu0
        %1669 = vmatprep.mubr.f32.mxu0 0.0
        %1670 = vmatmul.mubr.f32.gmra.mxu0 %v1464
        %v1671 = vpop.f32.mrf.mxu0
        %v1672 = vadd.f32 %v1398, %v1671
        %v1673 = vpop.f32.mrf.mxu0
        %1674 = vmatprep.mubr.f32.mxu0 0.0
        %1675 = vmatmul.mubr.f32.gmra.mxu0 %v1467
        %v1676 = vpop.f32.mrf.mxu0
        %v1677 = vadd.f32 %v1398, %v1676
        %v1678 = vpop.f32.mrf.mxu0
        %1679 = vmatprep.mubr.f32.mxu0 0.0
        %1680 = vmatmul.mubr.f32.gmra.mxu0 %v1470
        %v1681 = vpop.f32.mrf.mxu0
        %v1682 = vadd.f32 %v1398, %v1681
        %v1683 = vpop.f32.mrf.mxu0
        %1684 = vmatprep.mubr.f32.mxu0 0.0
        %1685 = vmatmul.mubr.f32.gmra.mxu0 %v1473
        %v1686 = vpop.f32.mrf.mxu0
        %v1687 = vadd.f32 %v1398, %v1686
        %v1688 = vpop.f32.mrf.mxu0
        %1689 = vmatprep.mubr.f32.mxu0 0.0
        %1690 = vmatmul.mubr.f32.gmra.mxu0 %v1476
        %v1691 = vpop.f32.mrf.mxu0
        %v1692 = vadd.f32 %v1398, %v1691
        %v1693 = vpop.f32.mrf.mxu0
        %1694 = vmatprep.mubr.f32.mxu0 0.0
        %1695 = vmatmul.mubr.f32.gmra.mxu0 %v1479
        %v1696 = vpop.f32.mrf.mxu0
        %v1697 = vadd.f32 %v1398, %v1696
        %v1698 = vpop.f32.mrf.mxu0
        %1699 = vmatprep.mubr.f32.mxu0 0.0
        %1700 = vmatmul.mubr.f32.gmra.mxu0 %v1482
        %v1701 = vpop.f32.mrf.mxu0
        %v1702 = vadd.f32 %v1398, %v1701
        %v1703 = vpop.f32.mrf.mxu0
        %1704 = vmatprep.mubr.f32.mxu0 0.0
        %1705 = vmatmul.mubr.f32.gmra.mxu0 %v1485
        %v1706 = vpop.f32.mrf.mxu0
        %v1707 = vadd.f32 %v1398, %v1706
        %v1708 = vpop.f32.mrf.mxu0
        %1709 = vmatprep.mubr.f32.mxu0 0.0
        %1710 = vmatmul.mubr.f32.gmra.mxu0 %v1488
        %v1711 = vpop.f32.mrf.mxu0
        %v1712 = vadd.f32 %v1398, %v1711
        %v1713 = vpop.f32.mrf.mxu0
        %1714 = vmatprep.mubr.f32.mxu0 0.0
        %1715 = vmatmul.mubr.f32.gmra.mxu0 %v1491
        %v1716 = vpop.f32.mrf.mxu0
        %v1717 = vadd.f32 %v1398, %v1716
        %v1718 = vpop.f32.mrf.mxu0
        %1719 = vmatprep.mubr.f32.mxu0 0.0
        %1720 = vmatmul.mubr.f32.gmra.mxu0 %v1494
        %v1721 = vpop.f32.mrf.mxu0
        %v1722 = vadd.f32 %v1398, %v1721
        %v1723 = vpop.f32.mrf.mxu0
        %1724 = vdwg.mxu0
        %vm1725 = vcmask 64512
        %1726 = vst.msk [vmem:[%s221] sm:$0xff] %vm1725, %v1567
        %1727 = vst.msk [vmem:[%s221 + $0x8] sm:$0xff] %vm1725, %v1572
        %1728 = vst.msk [vmem:[%s221 + $0x10] sm:$0xff] %vm1725, %v1577
        %1729 = vst.msk [vmem:[%s221 + $0x18] sm:$0xff] %vm1725, %v1582
        %1730 = vst.msk [vmem:[%s221 + $0x20] sm:$0xff] %vm1725, %v1587
        %1731 = vst.msk [vmem:[%s221 + $0x28] sm:$0xff] %vm1725, %v1592
        %1732 = vst.msk [vmem:[%s221 + $0x30] sm:$0xff] %vm1725, %v1597
        %1733 = vst.msk [vmem:[%s221 + $0x38] sm:$0xff] %vm1725, %v1602
        %1734 = vst.msk [vmem:[%s221 + $0x40] sm:$0xff] %vm1725, %v1607
        %1735 = vst.msk [vmem:[%s221 + $0x48] sm:$0xff] %vm1725, %v1612
        %1736 = vst.msk [vmem:[%s221 + $0x50] sm:$0xff] %vm1725, %v1617
        %1737 = vst.msk [vmem:[%s221 + $0x58] sm:$0xff] %vm1725, %v1622
        %1738 = vst.msk [vmem:[%s221 + $0x60] sm:$0xff] %vm1725, %v1627
        %1739 = vst.msk [vmem:[%s221 + $0x68] sm:$0xff] %vm1725, %v1632
        %1740 = vst.msk [vmem:[%s221 + $0x70] sm:$0xff] %vm1725, %v1637
        %1741 = vst.msk [vmem:[%s221 + $0x78] sm:$0xff] %vm1725, %v1642
        %1742 = vst.msk [vmem:[%s221 + $0x80] sm:$0xff] %vm1725, %v1647
        %1743 = vst.msk [vmem:[%s221 + $0x88] sm:$0xff] %vm1725, %v1652
        %1744 = vst.msk [vmem:[%s221 + $0x90] sm:$0xff] %vm1725, %v1657
        %1745 = vst.msk [vmem:[%s221 + $0x98] sm:$0xff] %vm1725, %v1662
        %1746 = vst.msk [vmem:[%s221 + $0xa0] sm:$0xff] %vm1725, %v1667
        %1747 = vst.msk [vmem:[%s221 + $0xa8] sm:$0xff] %vm1725, %v1672
        %1748 = vst.msk [vmem:[%s221 + $0xb0] sm:$0xff] %vm1725, %v1677
        %1749 = vst.msk [vmem:[%s221 + $0xb8] sm:$0xff] %vm1725, %v1682
        %1750 = vst.msk [vmem:[%s221 + $0xc0] sm:$0xff] %vm1725, %v1687
        %1751 = vst.msk [vmem:[%s221 + $0xc8] sm:$0xff] %vm1725, %v1692
        %1752 = vst.msk [vmem:[%s221 + $0xd0] sm:$0xff] %vm1725, %v1697
        %1753 = vst.msk [vmem:[%s221 + $0xd8] sm:$0xff] %vm1725, %v1702
        %1754 = vst.msk [vmem:[%s221 + $0xe0] sm:$0xff] %vm1725, %v1707
        %1755 = vst.msk [vmem:[%s221 + $0xe8] sm:$0xff] %vm1725, %v1712
        %1756 = vst.msk [vmem:[%s221 + $0xf0] sm:$0xff] %vm1725, %v1717
        %1757 = vst.msk [vmem:[%s221 + $0xf8] sm:$0xff] %vm1725, %v1722
        %v1758 = vld [vmem:[#allocation3] sm:$0x1]
        %v1759 = vsel %vm1725, %v1567, 0.0
        %v1760 = vsel %vm1725, %v1572, 0.0
        %v1761 = vadd.f32 %v1759, %v1760
        %v1762 = vsel %vm1725, %v1577, 0.0
        %v1763 = vadd.f32 %v1761, %v1762
        %v1764 = vsel %vm1725, %v1582, 0.0
        %v1765 = vadd.f32 %v1763, %v1764
        %v1766 = vsel %vm1725, %v1587, 0.0
        %v1767 = vadd.f32 %v1765, %v1766
        %v1768 = vsel %vm1725, %v1592, 0.0
        %v1769 = vadd.f32 %v1767, %v1768
        %v1770 = vsel %vm1725, %v1597, 0.0
        %v1771 = vadd.f32 %v1769, %v1770
        %v1772 = vsel %vm1725, %v1602, 0.0
        %v1773 = vadd.f32 %v1771, %v1772
        %v1774 = vsel %vm1725, %v1607, 0.0
        %v1775 = vadd.f32 %v1773, %v1774
        %v1776 = vsel %vm1725, %v1612, 0.0
        %v1777 = vadd.f32 %v1775, %v1776
        %v1778 = vsel %vm1725, %v1617, 0.0
        %v1779 = vadd.f32 %v1777, %v1778
        %v1780 = vsel %vm1725, %v1622, 0.0
        %v1781 = vadd.f32 %v1779, %v1780
        %v1782 = vsel %vm1725, %v1627, 0.0
        %v1783 = vadd.f32 %v1781, %v1782
        %v1784 = vsel %vm1725, %v1632, 0.0
        %v1785 = vadd.f32 %v1783, %v1784
        %v1786 = vsel %vm1725, %v1637, 0.0
        %v1787 = vadd.f32 %v1785, %v1786
        %v1788 = vsel %vm1725, %v1642, 0.0
        %v1789 = vadd.f32 %v1787, %v1788
        %v1790 = vsel %vm1725, %v1647, 0.0
        %v1791 = vadd.f32 %v1789, %v1790
        %v1792 = vsel %vm1725, %v1652, 0.0
        %v1793 = vadd.f32 %v1791, %v1792
        %v1794 = vsel %vm1725, %v1657, 0.0
        %v1795 = vadd.f32 %v1793, %v1794
        %v1796 = vsel %vm1725, %v1662, 0.0
        %v1797 = vadd.f32 %v1795, %v1796
        %v1798 = vsel %vm1725, %v1667, 0.0
        %v1799 = vadd.f32 %v1797, %v1798
        %v1800 = vsel %vm1725, %v1672, 0.0
        %v1801 = vadd.f32 %v1799, %v1800
        %v1802 = vsel %vm1725, %v1677, 0.0
        %v1803 = vadd.f32 %v1801, %v1802
        %v1804 = vsel %vm1725, %v1682, 0.0
        %v1805 = vadd.f32 %v1803, %v1804
        %v1806 = vsel %vm1725, %v1687, 0.0
        %v1807 = vadd.f32 %v1805, %v1806
        %v1808 = vsel %vm1725, %v1692, 0.0
        %v1809 = vadd.f32 %v1807, %v1808
        %v1810 = vsel %vm1725, %v1697, 0.0
        %v1811 = vadd.f32 %v1809, %v1810
        %v1812 = vsel %vm1725, %v1702, 0.0
        %v1813 = vadd.f32 %v1811, %v1812
        %v1814 = vsel %vm1725, %v1707, 0.0
        %v1815 = vadd.f32 %v1813, %v1814
        %v1816 = vsel %vm1725, %v1712, 0.0
        %v1817 = vadd.f32 %v1815, %v1816
        %v1818 = vsel %vm1725, %v1717, 0.0
        %v1819 = vadd.f32 %v1817, %v1818
        %v1820 = vsel %vm1725, %v1722, 0.0
        %v1821 = vadd.f32 %v1819, %v1820
        %v1822 = vrot.slane %v1821, 4
        %v1823 = vadd.f32 %v1821, %v1822
        %v1824 = vrot.slane %v1823, 2
        %v1825 = vadd.f32 %v1823, %v1824
        %v1826 = vrot.slane %v1825, 1
        %v1827 = vadd.f32 %v1825, %v1826
        %v1828 = vadd.f32 %v1758, %v1827
        %vm1829 = vcmask 57344
        %1830 = vst.msk [vmem:[#allocation3] sm:$0x1] %vm1829, %v1828
        %v1831 = vld [vmem:[#allocation5] sm:$0x1]
        %v1832 = vmul.f32 %v1567, %v1567
        %v1833 = vmul.f32 %v1572, %v1572
        %v1834 = vmul.f32 %v1577, %v1577
        %v1835 = vmul.f32 %v1582, %v1582
        %v1836 = vmul.f32 %v1587, %v1587
        %v1837 = vmul.f32 %v1592, %v1592
        %v1838 = vmul.f32 %v1597, %v1597
        %v1839 = vmul.f32 %v1602, %v1602
        %v1840 = vmul.f32 %v1607, %v1607
        %v1841 = vmul.f32 %v1612, %v1612
        %v1842 = vmul.f32 %v1617, %v1617
        %v1843 = vmul.f32 %v1622, %v1622
        %v1844 = vmul.f32 %v1627, %v1627
        %v1845 = vmul.f32 %v1632, %v1632
        %v1846 = vmul.f32 %v1637, %v1637
        %v1847 = vmul.f32 %v1642, %v1642
        %v1848 = vmul.f32 %v1647, %v1647
        %v1849 = vmul.f32 %v1652, %v1652
        %v1850 = vmul.f32 %v1657, %v1657
        %v1851 = vmul.f32 %v1662, %v1662
        %v1852 = vmul.f32 %v1667, %v1667
        %v1853 = vmul.f32 %v1672, %v1672
        %v1854 = vmul.f32 %v1677, %v1677
        %v1855 = vmul.f32 %v1682, %v1682
        %v1856 = vmul.f32 %v1687, %v1687
        %v1857 = vmul.f32 %v1692, %v1692
        %v1858 = vmul.f32 %v1697, %v1697
        %v1859 = vmul.f32 %v1702, %v1702
        %v1860 = vmul.f32 %v1707, %v1707
        %v1861 = vmul.f32 %v1712, %v1712
        %v1862 = vmul.f32 %v1717, %v1717
        %v1863 = vmul.f32 %v1722, %v1722
        %v1864 = vsel %vm1725, %v1832, 0.0
        %v1865 = vsel %vm1725, %v1833, 0.0
        %v1866 = vadd.f32 %v1864, %v1865
        %v1867 = vsel %vm1725, %v1834, 0.0
        %v1868 = vadd.f32 %v1866, %v1867
        %v1869 = vsel %vm1725, %v1835, 0.0
        %v1870 = vadd.f32 %v1868, %v1869
        %v1871 = vsel %vm1725, %v1836, 0.0
        %v1872 = vadd.f32 %v1870, %v1871
        %v1873 = vsel %vm1725, %v1837, 0.0
        %v1874 = vadd.f32 %v1872, %v1873
        %v1875 = vsel %vm1725, %v1838, 0.0
        %v1876 = vadd.f32 %v1874, %v1875
        %v1877 = vsel %vm1725, %v1839, 0.0
        %v1878 = vadd.f32 %v1876, %v1877
        %v1879 = vsel %vm1725, %v1840, 0.0
        %v1880 = vadd.f32 %v1878, %v1879
        %v1881 = vsel %vm1725, %v1841, 0.0
        %v1882 = vadd.f32 %v1880, %v1881
        %v1883 = vsel %vm1725, %v1842, 0.0
        %v1884 = vadd.f32 %v1882, %v1883
        %v1885 = vsel %vm1725, %v1843, 0.0
        %v1886 = vadd.f32 %v1884, %v1885
        %v1887 = vsel %vm1725, %v1844, 0.0
        %v1888 = vadd.f32 %v1886, %v1887
        %v1889 = vsel %vm1725, %v1845, 0.0
        %v1890 = vadd.f32 %v1888, %v1889
        %v1891 = vsel %vm1725, %v1846, 0.0
        %v1892 = vadd.f32 %v1890, %v1891
        %v1893 = vsel %vm1725, %v1847, 0.0
        %v1894 = vadd.f32 %v1892, %v1893
        %v1895 = vsel %vm1725, %v1848, 0.0
        %v1896 = vadd.f32 %v1894, %v1895
        %v1897 = vsel %vm1725, %v1849, 0.0
        %v1898 = vadd.f32 %v1896, %v1897
        %v1899 = vsel %vm1725, %v1850, 0.0
        %v1900 = vadd.f32 %v1898, %v1899
        %v1901 = vsel %vm1725, %v1851, 0.0
        %v1902 = vadd.f32 %v1900, %v1901
        %v1903 = vsel %vm1725, %v1852, 0.0
        %v1904 = vadd.f32 %v1902, %v1903
        %v1905 = vsel %vm1725, %v1853, 0.0
        %v1906 = vadd.f32 %v1904, %v1905
        %v1907 = vsel %vm1725, %v1854, 0.0
        %v1908 = vadd.f32 %v1906, %v1907
        %v1909 = vsel %vm1725, %v1855, 0.0
        %v1910 = vadd.f32 %v1908, %v1909
        %v1911 = vsel %vm1725, %v1856, 0.0
        %v1912 = vadd.f32 %v1910, %v1911
        %v1913 = vsel %vm1725, %v1857, 0.0
        %v1914 = vadd.f32 %v1912, %v1913
        %v1915 = vsel %vm1725, %v1858, 0.0
        %v1916 = vadd.f32 %v1914, %v1915
        %v1917 = vsel %vm1725, %v1859, 0.0
        %v1918 = vadd.f32 %v1916, %v1917
        %v1919 = vsel %vm1725, %v1860, 0.0
        %v1920 = vadd.f32 %v1918, %v1919
        %v1921 = vsel %vm1725, %v1861, 0.0
        %v1922 = vadd.f32 %v1920, %v1921
        %v1923 = vsel %vm1725, %v1862, 0.0
        %v1924 = vadd.f32 %v1922, %v1923
        %v1925 = vsel %vm1725, %v1863, 0.0
        %v1926 = vadd.f32 %v1924, %v1925
        %v1927 = vrot.slane %v1926, 4
        %v1928 = vadd.f32 %v1926, %v1927
        %v1929 = vrot.slane %v1928, 2
        %v1930 = vadd.f32 %v1928, %v1929
        %v1931 = vrot.slane %v1930, 1
        %v1932 = vadd.f32 %v1930, %v1931
        %v1933 = vadd.f32 %v1831, %v1932
        %1934 = vst.msk [vmem:[#allocation5] sm:$0x1] %vm1829, %v1933
        %p1935 = scmp.lt.s32.totalorder %s19, 1
        %s1936 = scalar_select %p1935, %s19, 1
        %s1937 = smul.addr %s1936, 32
        %s1938 = smul.addr %s1937, 8
        %s1939 = scalar_lea.vmem %s3, %s1938
        // Predicated region
        $region37: #{tpu_custom_call.1} parent=31 // pred_check
          %p1940 = pneg %p105
        $region38: #{tpu_custom_call.1} parent=31 // pred_check_branch
          %1942 = sbr.rel (%p1940) target = $region40
        $region39: #{tpu_custom_call.1} parent=31 // pred_region
          _
        $region40: #{tpu_custom_call.1} parent=31 // pred_fallthru
          _
        // Predicated region
        $region41: #{tpu_custom_call.1} parent=31 // pred_check
          %p1943 = pneg %p126
        $region42: #{tpu_custom_call.1} parent=31 // pred_check_branch
          %1945 = sbr.rel (%p1943) target = $region44
        $region43: #{tpu_custom_call.1} parent=31 // pred_region
          %s1947 = ssub.s32 16, 16
          %1948 = vsyncadd [#allocation4], %s1947
          %s1950 = sshll.u32 [#allocation3], 4
          %s1951 = int_to_ptr.vmem [resolvable:$true] %s1950
          %1953 = dma.vmem_to_hbm [thread:$0]  %s1951, 16, %s4, [#allocation4]
        $region44: #{tpu_custom_call.1} parent=31 // pred_fallthru
          _
        // Predicated region
        $region45: #{tpu_custom_call.1} parent=31 // pred_check
          %p1954 = pneg %p147
        $region46: #{tpu_custom_call.1} parent=31 // pred_check_branch
          %1956 = sbr.rel (%p1954) target = $region48
        $region47: #{tpu_custom_call.1} parent=31 // pred_region
          %s1958 = ssub.s32 16, 16
          %1959 = vsyncadd [#allocation6], %s1958
          %s1961 = sshll.u32 [#allocation5], 4
          %s1962 = int_to_ptr.vmem [resolvable:$true] %s1961
          %1964 = dma.vmem_to_hbm [thread:$0]  %s1962, 16, %s5, [#allocation6]
        $region48: #{tpu_custom_call.1} parent=31 // pred_fallthru
          _
        // Predicated region
        $region49: #{tpu_custom_call.1} parent=31 // pred_check
          %p1965 = pneg %p126
        $region50: #{tpu_custom_call.1} parent=31 // pred_check_branch
          %1967 = sbr.rel (%p1965) target = $region52
        $region51: #{tpu_custom_call.1} parent=31 // pred_region
          %1968 = dma.done [#allocation4], 16
        $region52: #{tpu_custom_call.1} parent=31 // pred_fallthru
          _
        // Predicated region
        $region53: #{tpu_custom_call.1} parent=31 // pred_check
          %p1969 = pneg %p147
        $region54: #{tpu_custom_call.1} parent=31 // pred_check_branch
          %1971 = sbr.rel (%p1969) target = $region56
        $region55: #{tpu_custom_call.1} parent=31 // pred_region
          %1972 = dma.done [#allocation6], 16
        $region56: #{tpu_custom_call.1} parent=31 // pred_fallthru
          _
      $region32: #{tpu_custom_call.1} parent=5 // pred_fallthru
        _
      %p1973 = scmp.le.s32.totalorder 2, %s14
      // Predicated region
      $region57: #{tpu_custom_call.1} parent=5 // pred_check
        %p1974 = pneg %p1973
      $region58: #{tpu_custom_call.1} parent=5 // pred_check_branch
        %1976 = sbr.rel (%p1974) target = $region60
      $region59: #{tpu_custom_call.1} parent=5 // pred_region
        %s1977 = ssub.s32 %s14, 2
        // Predicated region
        $region61: #{tpu_custom_call.1} parent=59 // pred_check
          %p1978 = pneg %p111
        $region62: #{tpu_custom_call.1} parent=59 // pred_check_branch
          %1980 = sbr.rel (%p1978) target = $region64
        $region63: #{tpu_custom_call.1} parent=59 // pred_region
          %p1981 = scmp.lt.s32.totalorder %s20, 1
          %s1982 = scalar_select %p1981, %s20, 1
          %s1983 = smul.addr %s1982, 32
          %s1984 = smul.addr %s1983, 8
          %s1985 = scalar_lea.vmem %s3, %s1984
        $region64: #{tpu_custom_call.1} parent=59 // pred_fallthru
          _
      $region60: #{tpu_custom_call.1} parent=5 // pred_fallthru
        _
    $region6: #{tpu_custom_call.1} parent=1 // loop_footer
      %s18 = sadd.s32 1, %s14
    $region7: #{tpu_custom_call.1} parent=1 // loop_footer_branch
      %13 = sbr.rel target = $region3
    $region8: #{tpu_custom_call.1} parent=1 // loop_exit
      _
    %1986 = vsyncpa [#allocation4], 1
    %s1987 = scalar_lea.sflag [#allocation4], 1
    %1988 = vsyncpa %s1987, 1
    %1989 = vsyncpa [#allocation6], 1

</llo_original>
